<compile_context>
chip_gen: v6e
topology: v6e:2x2x1
jax: 0.10.0
libtpu: 0.0.40
codegen_flags: <defaults>
</compile_context>

<pallas_src>
import jax
import jax.numpy as jnp
from jax.experimental import pallas as pl
from jax.experimental.pallas import tpu as pltpu

INPUT_SIZE = 21
HIDDEN_SIZE = 50
OUTPUT_SIZE = 24
HP = 128          # hidden size padded so each gate occupies one full lane tile
OP = 128          # FC output padded to one full lane tile (lane-dense store)
SUBLANE = 8       # f32 sublane count; batch padded to a multiple of this


def lstm_fc_kernel(x_ref, w_ih_ref, w_hh_ref, b_ref, w_fc_ref, b_fc_ref,
                   out_ref, xp_ref):
    """Single-invocation LSTM + FC.

    x_ref   : (T*Bp, F)    time-major, batch padded to Bp rows per step
    w_ih_ref: (F, 4*HP)    gate-blocked, zero-padded columns
    w_hh_ref: (HP, 4*HP)   zero-padded rows/columns
    b_ref   : (1, 4*HP)    b_ih + b_hh, zero in pad lanes
    w_fc_ref: (HP, OP)     zero-padded rows/columns
    b_fc_ref: (1, OP)      zero-padded columns
    out_ref : (Bp, OP)
    xp_ref  : (T*Bp, 4*HP) VMEM scratch holding the hoisted input projection
    """
    bp = out_ref.shape[0]
    tb = x_ref.shape[0]
    t_steps = tb // bp
    hp = w_hh_ref.shape[0]

    # Hoisted input projection: one big matmul instead of T tiny per-step
    # matmuls on the serial recurrent path.  Staged in VMEM scratch so its
    # 32 vregs are not held live across the unrolled recurrence.
    xp_ref[...] = jnp.dot(x_ref[...], w_ih_ref[...],
                          preferred_element_type=jnp.float32)

    w_hh = w_hh_ref[...]                                      # loaded once
    b = b_ref[...]                                            # (1, 4*HP)
    h = jnp.zeros((bp, hp), jnp.float32)
    c = jnp.zeros((bp, hp), jnp.float32)

    # T is small & static -> fully-unrolled Python loop (concrete, aligned
    # slice indices; no per-step grid/pipeline overhead).
    for t in range(t_steps):
        gates = (xp_ref[t * bp:(t + 1) * bp, :]               # 4 aligned vlds
                 + jnp.dot(h, w_hh, preferred_element_type=jnp.float32)
                 + b)                                         # per-step bias add
        # PyTorch gate order [i | f | g | o]; each slice is one 128-lane tile.
        i_g = jax.nn.sigmoid(gates[:, 0 * hp:1 * hp])
        f_g = jax.nn.sigmoid(gates[:, 1 * hp:2 * hp])
        g_g = jnp.tanh(gates[:, 2 * hp:3 * hp])
        o_g = jax.nn.sigmoid(gates[:, 3 * hp:4 * hp])
        c = f_g * c + i_g * g_g
        h = o_g * jnp.tanh(c)
        # pad-lane invariant: gate pre-activations are 0 there, so g_g == 0
        # (tanh(0)); i/f/o are 0.5 but c stays 0 and therefore h stays 0.

    # last_out = lstm_out[:, -1, :]; out = fc(last_out); lane-dense store.
    out_ref[...] = (jnp.dot(h, w_fc_ref[...], preferred_element_type=jnp.float32)
                    + b_fc_ref[...]).astype(out_ref.dtype)


def _pad_gate_blocks(w, h, hp):
    """(4h, ...) -> (4hp, ...), zero-padding each of the 4 gate blocks to hp."""
    g = w.reshape(4, h, *w.shape[1:])
    pad = [(0, 0), (0, hp - h)] + [(0, 0)] * (w.ndim - 1)
    return jnp.pad(g, pad).reshape(4 * hp, *w.shape[1:])


def prepare_params(params):
    """One-time weight prep into kernel layout (run OUTSIDE the per-call path)."""
    H, O = HIDDEN_SIZE, OUTPUT_SIZE
    w_ih_p = _pad_gate_blocks(params["w_ih"], H, HP).T                 # (F, 4*HP)
    w_hh_c = jnp.pad(params["w_hh"], ((0, 0), (0, HP - H)))            # (4H, HP)
    w_hh_p = _pad_gate_blocks(w_hh_c, H, HP).T                         # (HP, 4*HP)
    b_p = _pad_gate_blocks(
        (params["b_ih"] + params["b_hh"])[:, None], H, HP).reshape(1, 4 * HP)
    w_fc_p = jnp.pad(params["w_fc"].T, ((0, HP - H), (0, OP - O)))     # (HP, OP)
    b_fc_p = jnp.pad(params["b_fc"].reshape(1, O), ((0, 0), (0, OP - O)))
    return {
        "w_ih": jax.device_put(w_ih_p),
        "w_hh": jax.device_put(w_hh_p),
        "b": jax.device_put(b_p),
        "w_fc": jax.device_put(w_fc_p),
        "b_fc": jax.device_put(b_fc_p),
    }


@jax.jit
def lstm_model_forward(x, kp):
    """x: (B, T, input_size) float32, kp: prepare_params(...) output
    -> (B, output_size) float32."""
    B, T, F = x.shape
    Bp = ((B + SUBLANE - 1) // SUBLANE) * SUBLANE

    # Input prep (depends on x, so stays in the jitted path): time-major,
    # batch padded to a sublane multiple, flattened to (T*Bp, F).
    x_tm = jnp.transpose(x, (1, 0, 2))                                 # (T, B, F)
    x_tm = jnp.pad(x_tm, ((0, 0), (0, Bp - B), (0, 0)))
    x_2d = x_tm.reshape(T * Bp, F)

    out_p = pl.pallas_call(
        lstm_fc_kernel,
        out_shape=jax.ShapeDtypeStruct((Bp, OP), jnp.float32),
        grid=(1,),
        in_specs=[
            pl.BlockSpec((T * Bp, F), lambda i: (0, 0)),
            pl.BlockSpec((F, 4 * HP), lambda i: (0, 0)),
            pl.BlockSpec((HP, 4 * HP), lambda i: (0, 0)),
            pl.BlockSpec((1, 4 * HP), lambda i: (0, 0)),
            pl.BlockSpec((HP, OP), lambda i: (0, 0)),
            pl.BlockSpec((1, OP), lambda i: (0, 0)),
        ],
        out_specs=pl.BlockSpec((Bp, OP), lambda i: (0, 0)),
        scratch_shapes=[pltpu.VMEM((T * Bp, 4 * HP), jnp.float32)],
        compiler_params=pltpu.CompilerParams(
            dimension_semantics=("arbitrary",)),
    )(x_2d, kp["w_ih"], kp["w_hh"], kp["b"], kp["w_fc"], kp["b_fc"])

    return out_p[:B, :OUTPUT_SIZE]


def lstm_model_ref(x, params):
    """Pure-JAX reference matching torch.nn.LSTM(batch_first) + Linear."""
    B, T, F = x.shape
    H = HIDDEN_SIZE
    w_ih, w_hh = params["w_ih"], params["w_hh"]
    b = params["b_ih"] + params["b_hh"]

    def step(carry, x_t):
        h, c = carry
        gates = x_t @ w_ih.T + h @ w_hh.T + b
        i = jax.nn.sigmoid(gates[:, 0:H])
        f = jax.nn.sigmoid(gates[:, H:2 * H])
        g = jnp.tanh(gates[:, 2 * H:3 * H])
        o = jax.nn.sigmoid(gates[:, 3 * H:4 * H])
        c = f * c + i * g
        h = o * jnp.tanh(c)
        return (h, c), None

    init = (jnp.zeros((B, H), jnp.float32), jnp.zeros((B, H), jnp.float32))
    (h_last, _), _ = jax.lax.scan(step, init, jnp.transpose(x, (1, 0, 2)))
    return h_last @ params["w_fc"].T + params["b_fc"]


def init_params(key):
    """Deterministic init mirroring PyTorch default U(-1/sqrt(H), 1/sqrt(H))."""
    H, F, O = HIDDEN_SIZE, INPUT_SIZE, OUTPUT_SIZE
    k = 1.0 / jnp.sqrt(jnp.float32(H))
    keys = jax.random.split(key, 6)
    u = lambda kk, shape: jax.random.uniform(kk, shape, jnp.float32, -k, k)
    return {
        "w_ih": u(keys[0], (4 * H, F)),
        "w_hh": u(keys[1], (4 * H, H)),
        "b_ih": u(keys[2], (4 * H,)),
        "b_hh": u(keys[3], (4 * H,)),
        "w_fc": u(keys[4], (O, H)),
        "b_fc": u(keys[5], (O,)),
    }


if __name__ == "__main__":
    key = jax.random.PRNGKey(0)
    k_param, k_x = jax.random.split(key)

    params = init_params(k_param)
    kernel_params = prepare_params(params)       # one-time, outside per-call path

    B, T = 2, 8
    x = jax.random.normal(k_x, (B, T, INPUT_SIZE), jnp.float32)

    out = jax.block_until_ready(lstm_model_forward(x, kernel_params))
    ref = jax.block_until_ready(lstm_model_ref(x, params))

    assert out.shape == (B, OUTPUT_SIZE)
    assert jnp.allclose(out, ref, atol=1e-4, rtol=1e-4), "mismatch vs reference"

    print("KERNEL_OK")
</pallas_src>

<mosaic_0001>
module attributes {stable_mosaic.version = 11 : i64} {
  func.func @lstm_fc_kernel(%arg0: i32, %arg1: memref<64x21xf32, #tpu.memory_space<vmem>>, %arg2: memref<21x512xf32, #tpu.memory_space<vmem>>, %arg3: memref<128x512xf32, #tpu.memory_space<vmem>>, %arg4: memref<1x512xf32, #tpu.memory_space<vmem>>, %arg5: memref<128x128xf32, #tpu.memory_space<vmem>>, %arg6: memref<1x128xf32, #tpu.memory_space<vmem>>, %arg7: memref<8x128xf32, #tpu.memory_space<vmem>>, %arg8: memref<64x512xf32, #tpu.memory_space<vmem>>) attributes {dimension_semantics = [#tpu.dimension_semantics<arbitrary>], iteration_bounds = array<i64: 1>, scalar_prefetch = 0 : i64, scratch_operands = 1 : i64, tpu.core_type = #tpu.core_type<tc>, window_params = [{pipeline_mode = #tpu.pipeline_mode<synchronous>, transform_indices = @transform_0, window_bounds = array<i64: 64, 21>}, {pipeline_mode = #tpu.pipeline_mode<synchronous>, transform_indices = @transform_1, window_bounds = array<i64: 21, 512>}, {pipeline_mode = #tpu.pipeline_mode<synchronous>, transform_indices = @transform_2, window_bounds = array<i64: 128, 512>}, {pipeline_mode = #tpu.pipeline_mode<synchronous>, transform_indices = @transform_3, window_bounds = array<i64: 1, 512>}, {pipeline_mode = #tpu.pipeline_mode<synchronous>, transform_indices = @transform_4, window_bounds = array<i64: 128, 128>}, {pipeline_mode = #tpu.pipeline_mode<synchronous>, transform_indices = @transform_5, window_bounds = array<i64: 1, 128>}, {pipeline_mode = #tpu.pipeline_mode<synchronous>, transform_indices = @transform_6, window_bounds = array<i64: 8, 128>}]} {
    %c0 = arith.constant 0 : index
    %c0_0 = arith.constant 0 : index
    %0 = vector.load %arg1[%c0, %c0_0] : memref<64x21xf32, #tpu.memory_space<vmem>>, vector<64x21xf32>
    %c0_1 = arith.constant 0 : index
    %c0_2 = arith.constant 0 : index
    %1 = vector.load %arg2[%c0_1, %c0_2] : memref<21x512xf32, #tpu.memory_space<vmem>>, vector<21x512xf32>
    %cst = arith.constant dense<0.000000e+00> : vector<64x512xf32>
    %2 = tpu.matmul %0, %1, %cst {dimension_numbers = #tpu.dot_dimension_numbers<[1], [0], [0], [1], [0, 0, 1, 1], [], []>} : vector<64x21xf32>, vector<21x512xf32>, vector<64x512xf32> -> vector<64x512xf32>
    %c0_3 = arith.constant 0 : index
    %c0_4 = arith.constant 0 : index
    %3 = vector.load %arg8[%c0_3, %c0_4] : memref<64x512xf32, #tpu.memory_space<vmem>>, vector<64x512xf32>
    tpu.vector_store %arg8[%c0_3, %c0_4], %2 {strides = array<i32>} : memref<64x512xf32, #tpu.memory_space<vmem>>, vector<64x512xf32>,
    %c0_5 = arith.constant 0 : index
    %c0_6 = arith.constant 0 : index
    %4 = vector.load %arg3[%c0_5, %c0_6] : memref<128x512xf32, #tpu.memory_space<vmem>>, vector<128x512xf32>
    %c0_7 = arith.constant 0 : index
    %c0_8 = arith.constant 0 : index
    %5 = vector.load %arg4[%c0_7, %c0_8] : memref<1x512xf32, #tpu.memory_space<vmem>>, vector<1x512xf32>
    %cst_9 = arith.constant 0.000000e+00 : f32
    %6 = vector.broadcast %cst_9 : f32 to vector<8x128xf32>
    %cst_10 = arith.constant 0.000000e+00 : f32
    %7 = vector.broadcast %cst_10 : f32 to vector<8x128xf32>
    %c0_11 = arith.constant 0 : index
    %c0_12 = arith.constant 0 : index
    %8 = vector.load %arg8[%c0_11, %c0_12] : memref<64x512xf32, #tpu.memory_space<vmem>>, vector<8x512xf32>
    %cst_13 = arith.constant dense<0.000000e+00> : vector<8x512xf32>
    %9 = tpu.matmul %6, %4, %cst_13 {dimension_numbers = #tpu.dot_dimension_numbers<[1], [0], [0], [1], [0, 0, 1, 1], [], []>} : vector<8x128xf32>, vector<128x512xf32>, vector<8x512xf32> -> vector<8x512xf32>
    %10 = arith.addf %8, %9 : vector<8x512xf32>
    %11 = vector.broadcast %5 : vector<1x512xf32> to vector<8x512xf32>
    %12 = arith.addf %10, %11 : vector<8x512xf32>
    %13 = vector.extract_strided_slice %12 {offsets = [0, 0], sizes = [8, 128], strides = [1, 1]} : vector<8x512xf32> to vector<8x128xf32>
    %14 = arith.negf %13 : vector<8x128xf32>
    %15 = math.exp %14 : vector<8x128xf32>
    %cst_14 = arith.constant 1.000000e+00 : f32
    %16 = vector.broadcast %cst_14 : f32 to vector<8x128xf32>
    %17 = arith.addf %16, %15 : vector<8x128xf32>
    %18 = arith.divf %16, %17 : vector<8x128xf32>
    %19 = vector.extract_strided_slice %12 {offsets = [0, 128], sizes = [8, 128], strides = [1, 1]} : vector<8x512xf32> to vector<8x128xf32>
    %20 = arith.negf %19 : vector<8x128xf32>
    %21 = math.exp %20 : vector<8x128xf32>
    %cst_15 = arith.constant 1.000000e+00 : f32
    %22 = vector.broadcast %cst_15 : f32 to vector<8x128xf32>
    %23 = arith.addf %22, %21 : vector<8x128xf32>
    %24 = arith.divf %22, %23 : vector<8x128xf32>
    %25 = vector.extract_strided_slice %12 {offsets = [0, 256], sizes = [8, 128], strides = [1, 1]} : vector<8x512xf32> to vector<8x128xf32>
    %26 = math.tanh %25 : vector<8x128xf32>
    %27 = vector.extract_strided_slice %12 {offsets = [0, 384], sizes = [8, 128], strides = [1, 1]} : vector<8x512xf32> to vector<8x128xf32>
    %28 = arith.negf %27 : vector<8x128xf32>
    %29 = math.exp %28 : vector<8x128xf32>
    %cst_16 = arith.constant 1.000000e+00 : f32
    %30 = vector.broadcast %cst_16 : f32 to vector<8x128xf32>
    %31 = arith.addf %30, %29 : vector<8x128xf32>
    %32 = arith.divf %30, %31 : vector<8x128xf32>
    %33 = arith.mulf %24, %7 : vector<8x128xf32>
    %34 = arith.mulf %18, %26 : vector<8x128xf32>
    %35 = arith.addf %33, %34 : vector<8x128xf32>
    %36 = math.tanh %35 : vector<8x128xf32>
    %37 = arith.mulf %32, %36 : vector<8x128xf32>
    %c8 = arith.constant 8 : index
    %c0_17 = arith.constant 0 : index
    %38 = vector.load %arg8[%c8, %c0_17] : memref<64x512xf32, #tpu.memory_space<vmem>>, vector<8x512xf32>
    %cst_18 = arith.constant dense<0.000000e+00> : vector<8x512xf32>
    %39 = tpu.matmul %37, %4, %cst_18 {dimension_numbers = #tpu.dot_dimension_numbers<[1], [0], [0], [1], [0, 0, 1, 1], [], []>} : vector<8x128xf32>, vector<128x512xf32>, vector<8x512xf32> -> vector<8x512xf32>
    %40 = arith.addf %38, %39 : vector<8x512xf32>
    %41 = vector.broadcast %5 : vector<1x512xf32> to vector<8x512xf32>
    %42 = arith.addf %40, %41 : vector<8x512xf32>
    %43 = vector.extract_strided_slice %42 {offsets = [0, 0], sizes = [8, 128], strides = [1, 1]} : vector<8x512xf32> to vector<8x128xf32>
    %44 = arith.negf %43 : vector<8x128xf32>
    %45 = math.exp %44 : vector<8x128xf32>
    %cst_19 = arith.constant 1.000000e+00 : f32
    %46 = vector.broadcast %cst_19 : f32 to vector<8x128xf32>
    %47 = arith.addf %46, %45 : vector<8x128xf32>
    %48 = arith.divf %46, %47 : vector<8x128xf32>
    %49 = vector.extract_strided_slice %42 {offsets = [0, 128], sizes = [8, 128], strides = [1, 1]} : vector<8x512xf32> to vector<8x128xf32>
    %50 = arith.negf %49 : vector<8x128xf32>
    %51 = math.exp %50 : vector<8x128xf32>
    %cst_20 = arith.constant 1.000000e+00 : f32
    %52 = vector.broadcast %cst_20 : f32 to vector<8x128xf32>
    %53 = arith.addf %52, %51 : vector<8x128xf32>
    %54 = arith.divf %52, %53 : vector<8x128xf32>
    %55 = vector.extract_strided_slice %42 {offsets = [0, 256], sizes = [8, 128], strides = [1, 1]} : vector<8x512xf32> to vector<8x128xf32>
    %56 = math.tanh %55 : vector<8x128xf32>
    %57 = vector.extract_strided_slice %42 {offsets = [0, 384], sizes = [8, 128], strides = [1, 1]} : vector<8x512xf32> to vector<8x128xf32>
    %58 = arith.negf %57 : vector<8x128xf32>
    %59 = math.exp %58 : vector<8x128xf32>
    %cst_21 = arith.constant 1.000000e+00 : f32
    %60 = vector.broadcast %cst_21 : f32 to vector<8x128xf32>
    %61 = arith.addf %60, %59 : vector<8x128xf32>
    %62 = arith.divf %60, %61 : vector<8x128xf32>
    %63 = arith.mulf %54, %35 : vector<8x128xf32>
    %64 = arith.mulf %48, %56 : vector<8x128xf32>
    %65 = arith.addf %63, %64 : vector<8x128xf32>
    %66 = math.tanh %65 : vector<8x128xf32>
    %67 = arith.mulf %62, %66 : vector<8x128xf32>
    %c16 = arith.constant 16 : index
    %c0_22 = arith.constant 0 : index
    %68 = vector.load %arg8[%c16, %c0_22] : memref<64x512xf32, #tpu.memory_space<vmem>>, vector<8x512xf32>
    %cst_23 = arith.constant dense<0.000000e+00> : vector<8x512xf32>
    %69 = tpu.matmul %67, %4, %cst_23 {dimension_numbers = #tpu.dot_dimension_numbers<[1], [0], [0], [1], [0, 0, 1, 1], [], []>} : vector<8x128xf32>, vector<128x512xf32>, vector<8x512xf32> -> vector<8x512xf32>
    %70 = arith.addf %68, %69 : vector<8x512xf32>
    %71 = vector.broadcast %5 : vector<1x512xf32> to vector<8x512xf32>
    %72 = arith.addf %70, %71 : vector<8x512xf32>
    %73 = vector.extract_strided_slice %72 {offsets = [0, 0], sizes = [8, 128], strides = [1, 1]} : vector<8x512xf32> to vector<8x128xf32>
    %74 = arith.negf %73 : vector<8x128xf32>
    %75 = math.exp %74 : vector<8x128xf32>
    %cst_24 = arith.constant 1.000000e+00 : f32
    %76 = vector.broadcast %cst_24 : f32 to vector<8x128xf32>
    %77 = arith.addf %76, %75 : vector<8x128xf32>
    %78 = arith.divf %76, %77 : vector<8x128xf32>
    %79 = vector.extract_strided_slice %72 {offsets = [0, 128], sizes = [8, 128], strides = [1, 1]} : vector<8x512xf32> to vector<8x128xf32>
    %80 = arith.negf %79 : vector<8x128xf32>
    %81 = math.exp %80 : vector<8x128xf32>
    %cst_25 = arith.constant 1.000000e+00 : f32
    %82 = vector.broadcast %cst_25 : f32 to vector<8x128xf32>
    %83 = arith.addf %82, %81 : vector<8x128xf32>
    %84 = arith.divf %82, %83 : vector<8x128xf32>
    %85 = vector.extract_strided_slice %72 {offsets = [0, 256], sizes = [8, 128], strides = [1, 1]} : vector<8x512xf32> to vector<8x128xf32>
    %86 = math.tanh %85 : vector<8x128xf32>
    %87 = vector.extract_strided_slice %72 {offsets = [0, 384], sizes = [8, 128], strides = [1, 1]} : vector<8x512xf32> to vector<8x128xf32>
    %88 = arith.negf %87 : vector<8x128xf32>
    %89 = math.exp %88 : vector<8x128xf32>
    %cst_26 = arith.constant 1.000000e+00 : f32
    %90 = vector.broadcast %cst_26 : f32 to vector<8x128xf32>
    %91 = arith.addf %90, %89 : vector<8x128xf32>
    %92 = arith.divf %90, %91 : vector<8x128xf32>
    %93 = arith.mulf %84, %65 : vector<8x128xf32>
    %94 = arith.mulf %78, %86 : vector<8x128xf32>
    %95 = arith.addf %93, %94 : vector<8x128xf32>
    %96 = math.tanh %95 : vector<8x128xf32>
    %97 = arith.mulf %92, %96 : vector<8x128xf32>
    %c24 = arith.constant 24 : index
    %c0_27 = arith.constant 0 : index
    %98 = vector.load %arg8[%c24, %c0_27] : memref<64x512xf32, #tpu.memory_space<vmem>>, vector<8x512xf32>
    %cst_28 = arith.constant dense<0.000000e+00> : vector<8x512xf32>
    %99 = tpu.matmul %97, %4, %cst_28 {dimension_numbers = #tpu.dot_dimension_numbers<[1], [0], [0], [1], [0, 0, 1, 1], [], []>} : vector<8x128xf32>, vector<128x512xf32>, vector<8x512xf32> -> vector<8x512xf32>
    %100 = arith.addf %98, %99 : vector<8x512xf32>
    %101 = vector.broadcast %5 : vector<1x512xf32> to vector<8x512xf32>
    %102 = arith.addf %100, %101 : vector<8x512xf32>
    %103 = vector.extract_strided_slice %102 {offsets = [0, 0], sizes = [8, 128], strides = [1, 1]} : vector<8x512xf32> to vector<8x128xf32>
    %104 = arith.negf %103 : vector<8x128xf32>
    %105 = math.exp %104 : vector<8x128xf32>
    %cst_29 = arith.constant 1.000000e+00 : f32
    %106 = vector.broadcast %cst_29 : f32 to vector<8x128xf32>
    %107 = arith.addf %106, %105 : vector<8x128xf32>
    %108 = arith.divf %106, %107 : vector<8x128xf32>
    %109 = vector.extract_strided_slice %102 {offsets = [0, 128], sizes = [8, 128], strides = [1, 1]} : vector<8x512xf32> to vector<8x128xf32>
    %110 = arith.negf %109 : vector<8x128xf32>
    %111 = math.exp %110 : vector<8x128xf32>
    %cst_30 = arith.constant 1.000000e+00 : f32
    %112 = vector.broadcast %cst_30 : f32 to vector<8x128xf32>
    %113 = arith.addf %112, %111 : vector<8x128xf32>
    %114 = arith.divf %112, %113 : vector<8x128xf32>
    %115 = vector.extract_strided_slice %102 {offsets = [0, 256], sizes = [8, 128], strides = [1, 1]} : vector<8x512xf32> to vector<8x128xf32>
    %116 = math.tanh %115 : vector<8x128xf32>
    %117 = vector.extract_strided_slice %102 {offsets = [0, 384], sizes = [8, 128], strides = [1, 1]} : vector<8x512xf32> to vector<8x128xf32>
    %118 = arith.negf %117 : vector<8x128xf32>
    %119 = math.exp %118 : vector<8x128xf32>
    %cst_31 = arith.constant 1.000000e+00 : f32
    %120 = vector.broadcast %cst_31 : f32 to vector<8x128xf32>
    %121 = arith.addf %120, %119 : vector<8x128xf32>
    %122 = arith.divf %120, %121 : vector<8x128xf32>
    %123 = arith.mulf %114, %95 : vector<8x128xf32>
    %124 = arith.mulf %108, %116 : vector<8x128xf32>
    %125 = arith.addf %123, %124 : vector<8x128xf32>
    %126 = math.tanh %125 : vector<8x128xf32>
    %127 = arith.mulf %122, %126 : vector<8x128xf32>
    %c32 = arith.constant 32 : index
    %c0_32 = arith.constant 0 : index
    %128 = vector.load %arg8[%c32, %c0_32] : memref<64x512xf32, #tpu.memory_space<vmem>>, vector<8x512xf32>
    %cst_33 = arith.constant dense<0.000000e+00> : vector<8x512xf32>
    %129 = tpu.matmul %127, %4, %cst_33 {dimension_numbers = #tpu.dot_dimension_numbers<[1], [0], [0], [1], [0, 0, 1, 1], [], []>} : vector<8x128xf32>, vector<128x512xf32>, vector<8x512xf32> -> vector<8x512xf32>
    %130 = arith.addf %128, %129 : vector<8x512xf32>
    %131 = vector.broadcast %5 : vector<1x512xf32> to vector<8x512xf32>
    %132 = arith.addf %130, %131 : vector<8x512xf32>
    %133 = vector.extract_strided_slice %132 {offsets = [0, 0], sizes = [8, 128], strides = [1, 1]} : vector<8x512xf32> to vector<8x128xf32>
    %134 = arith.negf %133 : vector<8x128xf32>
    %135 = math.exp %134 : vector<8x128xf32>
    %cst_34 = arith.constant 1.000000e+00 : f32
    %136 = vector.broadcast %cst_34 : f32 to vector<8x128xf32>
    %137 = arith.addf %136, %135 : vector<8x128xf32>
    %138 = arith.divf %136, %137 : vector<8x128xf32>
    %139 = vector.extract_strided_slice %132 {offsets = [0, 128], sizes = [8, 128], strides = [1, 1]} : vector<8x512xf32> to vector<8x128xf32>
    %140 = arith.negf %139 : vector<8x128xf32>
    %141 = math.exp %140 : vector<8x128xf32>
    %cst_35 = arith.constant 1.000000e+00 : f32
    %142 = vector.broadcast %cst_35 : f32 to vector<8x128xf32>
    %143 = arith.addf %142, %141 : vector<8x128xf32>
    %144 = arith.divf %142, %143 : vector<8x128xf32>
    %145 = vector.extract_strided_slice %132 {offsets = [0, 256], sizes = [8, 128], strides = [1, 1]} : vector<8x512xf32> to vector<8x128xf32>
    %146 = math.tanh %145 : vector<8x128xf32>
    %147 = vector.extract_strided_slice %132 {offsets = [0, 384], sizes = [8, 128], strides = [1, 1]} : vector<8x512xf32> to vector<8x128xf32>
    %148 = arith.negf %147 : vector<8x128xf32>
    %149 = math.exp %148 : vector<8x128xf32>
    %cst_36 = arith.constant 1.000000e+00 : f32
    %150 = vector.broadcast %cst_36 : f32 to vector<8x128xf32>
    %151 = arith.addf %150, %149 : vector<8x128xf32>
    %152 = arith.divf %150, %151 : vector<8x128xf32>
    %153 = arith.mulf %144, %125 : vector<8x128xf32>
    %154 = arith.mulf %138, %146 : vector<8x128xf32>
    %155 = arith.addf %153, %154 : vector<8x128xf32>
    %156 = math.tanh %155 : vector<8x128xf32>
    %157 = arith.mulf %152, %156 : vector<8x128xf32>
    %c40 = arith.constant 40 : index
    %c0_37 = arith.constant 0 : index
    %158 = vector.load %arg8[%c40, %c0_37] : memref<64x512xf32, #tpu.memory_space<vmem>>, vector<8x512xf32>
    %cst_38 = arith.constant dense<0.000000e+00> : vector<8x512xf32>
    %159 = tpu.matmul %157, %4, %cst_38 {dimension_numbers = #tpu.dot_dimension_numbers<[1], [0], [0], [1], [0, 0, 1, 1], [], []>} : vector<8x128xf32>, vector<128x512xf32>, vector<8x512xf32> -> vector<8x512xf32>
    %160 = arith.addf %158, %159 : vector<8x512xf32>
    %161 = vector.broadcast %5 : vector<1x512xf32> to vector<8x512xf32>
    %162 = arith.addf %160, %161 : vector<8x512xf32>
    %163 = vector.extract_strided_slice %162 {offsets = [0, 0], sizes = [8, 128], strides = [1, 1]} : vector<8x512xf32> to vector<8x128xf32>
    %164 = arith.negf %163 : vector<8x128xf32>
    %165 = math.exp %164 : vector<8x128xf32>
    %cst_39 = arith.constant 1.000000e+00 : f32
    %166 = vector.broadcast %cst_39 : f32 to vector<8x128xf32>
    %167 = arith.addf %166, %165 : vector<8x128xf32>
    %168 = arith.divf %166, %167 : vector<8x128xf32>
    %169 = vector.extract_strided_slice %162 {offsets = [0, 128], sizes = [8, 128], strides = [1, 1]} : vector<8x512xf32> to vector<8x128xf32>
    %170 = arith.negf %169 : vector<8x128xf32>
    %171 = math.exp %170 : vector<8x128xf32>
    %cst_40 = arith.constant 1.000000e+00 : f32
    %172 = vector.broadcast %cst_40 : f32 to vector<8x128xf32>
    %173 = arith.addf %172, %171 : vector<8x128xf32>
    %174 = arith.divf %172, %173 : vector<8x128xf32>
    %175 = vector.extract_strided_slice %162 {offsets = [0, 256], sizes = [8, 128], strides = [1, 1]} : vector<8x512xf32> to vector<8x128xf32>
    %176 = math.tanh %175 : vector<8x128xf32>
    %177 = vector.extract_strided_slice %162 {offsets = [0, 384], sizes = [8, 128], strides = [1, 1]} : vector<8x512xf32> to vector<8x128xf32>
    %178 = arith.negf %177 : vector<8x128xf32>
    %179 = math.exp %178 : vector<8x128xf32>
    %cst_41 = arith.constant 1.000000e+00 : f32
    %180 = vector.broadcast %cst_41 : f32 to vector<8x128xf32>
    %181 = arith.addf %180, %179 : vector<8x128xf32>
    %182 = arith.divf %180, %181 : vector<8x128xf32>
    %183 = arith.mulf %174, %155 : vector<8x128xf32>
    %184 = arith.mulf %168, %176 : vector<8x128xf32>
    %185 = arith.addf %183, %184 : vector<8x128xf32>
    %186 = math.tanh %185 : vector<8x128xf32>
    %187 = arith.mulf %182, %186 : vector<8x128xf32>
    %c48 = arith.constant 48 : index
    %c0_42 = arith.constant 0 : index
    %188 = vector.load %arg8[%c48, %c0_42] : memref<64x512xf32, #tpu.memory_space<vmem>>, vector<8x512xf32>
    %cst_43 = arith.constant dense<0.000000e+00> : vector<8x512xf32>
    %189 = tpu.matmul %187, %4, %cst_43 {dimension_numbers = #tpu.dot_dimension_numbers<[1], [0], [0], [1], [0, 0, 1, 1], [], []>} : vector<8x128xf32>, vector<128x512xf32>, vector<8x512xf32> -> vector<8x512xf32>
    %190 = arith.addf %188, %189 : vector<8x512xf32>
    %191 = vector.broadcast %5 : vector<1x512xf32> to vector<8x512xf32>
    %192 = arith.addf %190, %191 : vector<8x512xf32>
    %193 = vector.extract_strided_slice %192 {offsets = [0, 0], sizes = [8, 128], strides = [1, 1]} : vector<8x512xf32> to vector<8x128xf32>
    %194 = arith.negf %193 : vector<8x128xf32>
    %195 = math.exp %194 : vector<8x128xf32>
    %cst_44 = arith.constant 1.000000e+00 : f32
    %196 = vector.broadcast %cst_44 : f32 to vector<8x128xf32>
    %197 = arith.addf %196, %195 : vector<8x128xf32>
    %198 = arith.divf %196, %197 : vector<8x128xf32>
    %199 = vector.extract_strided_slice %192 {offsets = [0, 128], sizes = [8, 128], strides = [1, 1]} : vector<8x512xf32> to vector<8x128xf32>
    %200 = arith.negf %199 : vector<8x128xf32>
    %201 = math.exp %200 : vector<8x128xf32>
    %cst_45 = arith.constant 1.000000e+00 : f32
    %202 = vector.broadcast %cst_45 : f32 to vector<8x128xf32>
    %203 = arith.addf %202, %201 : vector<8x128xf32>
    %204 = arith.divf %202, %203 : vector<8x128xf32>
    %205 = vector.extract_strided_slice %192 {offsets = [0, 256], sizes = [8, 128], strides = [1, 1]} : vector<8x512xf32> to vector<8x128xf32>
    %206 = math.tanh %205 : vector<8x128xf32>
    %207 = vector.extract_strided_slice %192 {offsets = [0, 384], sizes = [8, 128], strides = [1, 1]} : vector<8x512xf32> to vector<8x128xf32>
    %208 = arith.negf %207 : vector<8x128xf32>
    %209 = math.exp %208 : vector<8x128xf32>
    %cst_46 = arith.constant 1.000000e+00 : f32
    %210 = vector.broadcast %cst_46 : f32 to vector<8x128xf32>
    %211 = arith.addf %210, %209 : vector<8x128xf32>
    %212 = arith.divf %210, %211 : vector<8x128xf32>
    %213 = arith.mulf %204, %185 : vector<8x128xf32>
    %214 = arith.mulf %198, %206 : vector<8x128xf32>
    %215 = arith.addf %213, %214 : vector<8x128xf32>
    %216 = math.tanh %215 : vector<8x128xf32>
    %217 = arith.mulf %212, %216 : vector<8x128xf32>
    %c56 = arith.constant 56 : index
    %c0_47 = arith.constant 0 : index
    %218 = vector.load %arg8[%c56, %c0_47] : memref<64x512xf32, #tpu.memory_space<vmem>>, vector<8x512xf32>
    %cst_48 = arith.constant dense<0.000000e+00> : vector<8x512xf32>
    %219 = tpu.matmul %217, %4, %cst_48 {dimension_numbers = #tpu.dot_dimension_numbers<[1], [0], [0], [1], [0, 0, 1, 1], [], []>} : vector<8x128xf32>, vector<128x512xf32>, vector<8x512xf32> -> vector<8x512xf32>
    %220 = arith.addf %218, %219 : vector<8x512xf32>
    %221 = vector.broadcast %5 : vector<1x512xf32> to vector<8x512xf32>
    %222 = arith.addf %220, %221 : vector<8x512xf32>
    %223 = vector.extract_strided_slice %222 {offsets = [0, 0], sizes = [8, 128], strides = [1, 1]} : vector<8x512xf32> to vector<8x128xf32>
    %224 = arith.negf %223 : vector<8x128xf32>
    %225 = math.exp %224 : vector<8x128xf32>
    %cst_49 = arith.constant 1.000000e+00 : f32
    %226 = vector.broadcast %cst_49 : f32 to vector<8x128xf32>
    %227 = arith.addf %226, %225 : vector<8x128xf32>
    %228 = arith.divf %226, %227 : vector<8x128xf32>
    %229 = vector.extract_strided_slice %222 {offsets = [0, 128], sizes = [8, 128], strides = [1, 1]} : vector<8x512xf32> to vector<8x128xf32>
    %230 = arith.negf %229 : vector<8x128xf32>
    %231 = math.exp %230 : vector<8x128xf32>
    %cst_50 = arith.constant 1.000000e+00 : f32
    %232 = vector.broadcast %cst_50 : f32 to vector<8x128xf32>
    %233 = arith.addf %232, %231 : vector<8x128xf32>
    %234 = arith.divf %232, %233 : vector<8x128xf32>
    %235 = vector.extract_strided_slice %222 {offsets = [0, 256], sizes = [8, 128], strides = [1, 1]} : vector<8x512xf32> to vector<8x128xf32>
    %236 = math.tanh %235 : vector<8x128xf32>
    %237 = vector.extract_strided_slice %222 {offsets = [0, 384], sizes = [8, 128], strides = [1, 1]} : vector<8x512xf32> to vector<8x128xf32>
    %238 = arith.negf %237 : vector<8x128xf32>
    %239 = math.exp %238 : vector<8x128xf32>
    %cst_51 = arith.constant 1.000000e+00 : f32
    %240 = vector.broadcast %cst_51 : f32 to vector<8x128xf32>
    %241 = arith.addf %240, %239 : vector<8x128xf32>
    %242 = arith.divf %240, %241 : vector<8x128xf32>
    %243 = arith.mulf %234, %215 : vector<8x128xf32>
    %244 = arith.mulf %228, %236 : vector<8x128xf32>
    %245 = arith.addf %243, %244 : vector<8x128xf32>
    %246 = math.tanh %245 : vector<8x128xf32>
    %247 = arith.mulf %242, %246 : vector<8x128xf32>
    %c0_52 = arith.constant 0 : index
    %c0_53 = arith.constant 0 : index
    %248 = vector.load %arg5[%c0_52, %c0_53] : memref<128x128xf32, #tpu.memory_space<vmem>>, vector<128x128xf32>
    %cst_54 = arith.constant dense<0.000000e+00> : vector<8x128xf32>
    %249 = tpu.matmul %247, %248, %cst_54 {dimension_numbers = #tpu.dot_dimension_numbers<[1], [0], [0], [1], [0, 0, 1, 1], [], []>} : vector<8x128xf32>, vector<128x128xf32>, vector<8x128xf32> -> vector<8x128xf32>
    %c0_55 = arith.constant 0 : index
    %c0_56 = arith.constant 0 : index
    %250 = vector.load %arg6[%c0_55, %c0_56] : memref<1x128xf32, #tpu.memory_space<vmem>>, vector<1x128xf32>
    %251 = vector.broadcast %250 : vector<1x128xf32> to vector<8x128xf32>
    %252 = arith.addf %249, %251 : vector<8x128xf32>
    %c0_57 = arith.constant 0 : index
    %c0_58 = arith.constant 0 : index
    %253 = vector.load %arg7[%c0_57, %c0_58] : memref<8x128xf32, #tpu.memory_space<vmem>>, vector<8x128xf32>
    tpu.vector_store %arg7[%c0_57, %c0_58], %252 {strides = array<i32>} : memref<8x128xf32, #tpu.memory_space<vmem>>, vector<8x128xf32>,
    return
  }
  func.func @transform_0(%arg0: i32) -> (i32, i32) {
    %c0_i32 = arith.constant 0 : i32
    %c0_i32_0 = arith.constant 0 : i32
    %c0_i32_1 = arith.constant 0 : i32
    return %c0_i32, %c0_i32_0 : i32, i32
  }
  func.func @transform_1(%arg0: i32) -> (i32, i32) {
    %c0_i32 = arith.constant 0 : i32
    %c0_i32_0 = arith.constant 0 : i32
    %c0_i32_1 = arith.constant 0 : i32
    return %c0_i32, %c0_i32_0 : i32, i32
  }
  func.func @transform_2(%arg0: i32) -> (i32, i32) {
    %c0_i32 = arith.constant 0 : i32
    %c0_i32_0 = arith.constant 0 : i32
    %c0_i32_1 = arith.constant 0 : i32
    return %c0_i32, %c0_i32_0 : i32, i32
  }
  func.func @transform_3(%arg0: i32) -> (i32, i32) {
    %c0_i32 = arith.constant 0 : i32
    %c0_i32_0 = arith.constant 0 : i32
    %c0_i32_1 = arith.constant 0 : i32
    return %c0_i32, %c0_i32_0 : i32, i32
  }
  func.func @transform_4(%arg0: i32) -> (i32, i32) {
    %c0_i32 = arith.constant 0 : i32
    %c0_i32_0 = arith.constant 0 : i32
    %c0_i32_1 = arith.constant 0 : i32
    return %c0_i32, %c0_i32_0 : i32, i32
  }
  func.func @transform_5(%arg0: i32) -> (i32, i32) {
    %c0_i32 = arith.constant 0 : i32
    %c0_i32_0 = arith.constant 0 : i32
    %c0_i32_1 = arith.constant 0 : i32
    return %c0_i32, %c0_i32_0 : i32, i32
  }
  func.func @transform_6(%arg0: i32) -> (i32, i32) {
    %c0_i32 = arith.constant 0 : i32
    %c0_i32_0 = arith.constant 0 : i32
    %c0_i32_1 = arith.constant 0 : i32
    return %c0_i32, %c0_i32_0 : i32, i32
  }
}

</mosaic_0001>

<llo_original>
// kernel: lstm_model_forward.1
$region0: #{lstm_model_forward.1}
  #allocation0 [shape = 'u32[]', space=smem, size = 0x4, offset = 0x4, fixed_abs, tag = 'smem constant byte address 0x4 - core index']
  #allocation1 [shape = 'u32[144,128]{1,0:T(1,128)}', space=vmem, size = 0x12000, scoped, tag = 'internal scratch']
  #allocation2 [shape = 'f32[64,512]{1,0:T(8,128)}', space=vmem, size = 0x20000, scoped, tag = 'scratch operand']
  %s0 = inlined_call_operand.vmem [shape: f32[64,21], index: 0, kind: input, shape index: {}]
  %s1 = inlined_call_operand.vmem [shape: f32[21,512], index: 1, kind: input, shape index: {}]
  %s2 = inlined_call_operand.hbm [shape: f32[128,512], index: 2, kind: input, shape index: {}]
  %s3 = inlined_call_operand.vmem [shape: f32[1,512], index: 3, kind: input, shape index: {}]
  %s4 = inlined_call_operand.hbm [shape: f32[128,128], index: 4, kind: input, shape index: {}]
  %s5 = inlined_call_operand.vmem [shape: f32[1,128], index: 5, kind: input, shape index: {}]
  %s6 = inlined_call_operand.vmem [shape: f32[8,128], index: 6, kind: output, shape index: {}]
  %s7 = sld [smem:[#allocation0]]
  $region42: #{lstm_model_forward.1} parent=0
    _
  %s9 = ssub.s32 1, %s7
  %s10 = scalar_select 0, %s9, %s7
  $region1: #{lstm_model_forward.1} parent=0
    #allocation3 [shape = 'u8[262144]{0}', space=vmem, size = 0x40000, scoped, tag = 'input window, operand 2, single buffered']
    #allocation4 [shape = 's32[1]{0}', space=sflag, size = 0x4, scoped, tag = 'scoped memory for lstm_model_forward.1']
    #allocation5 [shape = 'u8[65536]{0}', space=vmem, size = 0x10000, scoped, tag = 'input window, operand 4, single buffered']
    #allocation6 [shape = 's32[1]{0}', space=sflag, size = 0x4, scoped, tag = 'scoped memory for lstm_model_forward.1']
    %11 = vsyncpa [#allocation4], 0
    %12 = vsyncpa [#allocation6], 0
    // Predicated region
    $region2: #{lstm_model_forward.1} parent=1 // pred_check
      _
    $region3: #{lstm_model_forward.1} parent=1 // pred_check_branch
      %14 = sbr.rel (0) target = $region5
    $region4: #{lstm_model_forward.1} parent=1 // pred_region
      _
    $region5: #{lstm_model_forward.1} parent=1 // pred_fallthru
      _
    // Predicated region
    $region6: #{lstm_model_forward.1} parent=1 // pred_check
      _
    $region7: #{lstm_model_forward.1} parent=1 // pred_check_branch
      %16 = sbr.rel (0) target = $region9
    $region8: #{lstm_model_forward.1} parent=1 // pred_region
      _
    $region9: #{lstm_model_forward.1} parent=1 // pred_fallthru
      _
    // Predicated region
    $region10: #{lstm_model_forward.1} parent=1 // pred_check
      _
    $region11: #{lstm_model_forward.1} parent=1 // pred_check_branch
      %18 = sbr.rel (0) target = $region13
    $region12: #{lstm_model_forward.1} parent=1 // pred_region
      %s20 = ssub.s32 8192, 8192
      %21 = vsyncadd [#allocation4], %s20
      %s22 = sshll.u32 [#allocation3], 4
      %s23 = int_to_ptr.vmem [resolvable:$true] %s22
      %28 = dma.hbm_to_vmem [thread:$0]  %s2, 8192, %s23, [#allocation4], 512, 512, 32
    $region13: #{lstm_model_forward.1} parent=1 // pred_fallthru
      _
    // Predicated region
    $region14: #{lstm_model_forward.1} parent=1 // pred_check
      _
    $region15: #{lstm_model_forward.1} parent=1 // pred_check_branch
      %30 = sbr.rel (0) target = $region17
    $region16: #{lstm_model_forward.1} parent=1 // pred_region
      _
    $region17: #{lstm_model_forward.1} parent=1 // pred_fallthru
      _
    // Predicated region
    $region18: #{lstm_model_forward.1} parent=1 // pred_check
      _
    $region19: #{lstm_model_forward.1} parent=1 // pred_check_branch
      %32 = sbr.rel (0) target = $region21
    $region20: #{lstm_model_forward.1} parent=1 // pred_region
      %s34 = ssub.s32 2048, 2048
      %35 = vsyncadd [#allocation6], %s34
      %s36 = sshll.u32 [#allocation5], 4
      %s37 = int_to_ptr.vmem [resolvable:$true] %s36
      %42 = dma.hbm_to_vmem [thread:$0]  %s4, 2048, %s37, [#allocation6], 128, 128, 8
    $region21: #{lstm_model_forward.1} parent=1 // pred_fallthru
      _
    // Predicated region
    $region22: #{lstm_model_forward.1} parent=1 // pred_check
      _
    $region23: #{lstm_model_forward.1} parent=1 // pred_check_branch
      %44 = sbr.rel (0) target = $region25
    $region24: #{lstm_model_forward.1} parent=1 // pred_region
      _
    $region25: #{lstm_model_forward.1} parent=1 // pred_fallthru
      _
    // Predicated region
    $region26: #{lstm_model_forward.1} parent=1 // pred_check
      _
    $region27: #{lstm_model_forward.1} parent=1 // pred_check_branch
      %46 = sbr.rel (0) target = $region29
    $region28: #{lstm_model_forward.1} parent=1 // pred_region
      %47 = dma.done [#allocation4], 8192
    $region29: #{lstm_model_forward.1} parent=1 // pred_fallthru
      _
    // Predicated region
    $region30: #{lstm_model_forward.1} parent=1 // pred_check
      _
    $region31: #{lstm_model_forward.1} parent=1 // pred_check_branch
      %49 = sbr.rel (0) target = $region33
    $region32: #{lstm_model_forward.1} parent=1 // pred_region
      %50 = dma.done [#allocation6], 2048
    $region33: #{lstm_model_forward.1} parent=1 // pred_fallthru
      _
    %v51 = vld [vmem:[%s0] sm:$0xff]
    %v52 = vld [vmem:[%s0 + $0x8] sm:$0xff]
    %v53 = vld [vmem:[%s0 + $0x10] sm:$0xff]
    %v54 = vld [vmem:[%s0 + $0x18] sm:$0xff]
    %v55 = vld [vmem:[%s0 + $0x20] sm:$0xff]
    %v56 = vld [vmem:[%s0 + $0x28] sm:$0xff]
    %v57 = vld [vmem:[%s0 + $0x30] sm:$0xff]
    %v58 = vld [vmem:[%s0 + $0x38] sm:$0xff]
    %v59 = vld [vmem:[%s1] sm:$0xff]
    %v60 = vld [vmem:[%s1 + $0x8] sm:$0xff]
    %v61 = vld [vmem:[%s1 + $0x10] sm:$0xff]
    %v62 = vld [vmem:[%s1 + $0x18] sm:$0xff]
    %v63 = vld [vmem:[%s1 + $0x20] sm:$0xff]
    %v64 = vld [vmem:[%s1 + $0x28] sm:$0xff]
    %v65 = vld [vmem:[%s1 + $0x30] sm:$0xff]
    %v66 = vld [vmem:[%s1 + $0x38] sm:$0xff]
    %v67 = vld [vmem:[%s1 + $0x40] sm:$0x1f]
    %v68 = vld [vmem:[%s1 + $0x48] sm:$0x1f]
    %v69 = vld [vmem:[%s1 + $0x50] sm:$0x1f]
    %v70 = vld [vmem:[%s1 + $0x58] sm:$0x1f]
    %vm71 = vcmask 171008
    %v73 = vsel %vm71, %v51, 0
    %v76 = vsel %vm71, %v52, 0
    %v79 = vsel %vm71, %v53, 0
    %v82 = vsel %vm71, %v54, 0
    %v85 = vsel %vm71, %v55, 0
    %v88 = vsel %vm71, %v56, 0
    %v91 = vsel %vm71, %v57, 0
    %v94 = vsel %vm71, %v58, 0
    %vm96 = vcmask 1044480
    %v98 = vsel %vm96, %v67, 0
    %v101 = vsel %vm96, %v68, 0
    %v104 = vsel %vm96, %v69, 0
    %v107 = vsel %vm96, %v70, 0
    %109 = vmatprep.subr.mxu0 0.0
    %110 = vmatpush1.msra.mxu0 0.0
    %111 = vmatprep.subr.mxu0 0.0
    %112 = vmatpush1.msra.mxu0 0.0
    %113 = vmatprep.subr.mxu0 0.0
    %114 = vmatpush1.msra.mxu0 0.0
    %115 = vmatprep.subr.mxu0 0.0
    %116 = vmatpush1.msra.mxu0 0.0
    %117 = vmatprep.subr.mxu0 0.0
    %118 = vmatpush1.msra.mxu0 0.0
    %119 = vmatprep.subr.mxu0 0.0
    %120 = vmatpush1.msra.mxu0 0.0
    %121 = vmatprep.subr.mxu0 0.0
    %122 = vmatpush1.msra.mxu0 0.0
    %123 = vmatprep.subr.mxu0 0.0
    %124 = vmatpush1.msra.mxu0 0.0
    %125 = vmatprep.subr.mxu0 0.0
    %126 = vmatpush1.msra.mxu0 0.0
    %127 = vmatprep.subr.mxu0 0.0
    %128 = vmatpush1.msra.mxu0 0.0
    %129 = vmatprep.subr.mxu0 0.0
    %130 = vmatpush1.msra.mxu0 0.0
    %131 = vmatprep.subr.mxu0 0.0
    %132 = vmatpush1.msra.mxu0 0.0
    %133 = vmatprep.subr.mxu0 0.0
    %134 = vmatpush1.msra.mxu0 0.0
    %135 = vmatprep.subr.mxu0 %v101
    %136 = vmatpush1.msra.mxu0 %v98
    %137 = vmatprep.subr.mxu0 %v64
    %138 = vmatpush1.msra.mxu0 %v63
    %139 = vmatprep.subr.mxu0 %v60
    %140 = vmatpush1.msra.mxu0 %v59
    %141 = vmatprep.subr.mxu0 0.0
    %142 = vmatpush2.msra.mxu0 0.0
    %143 = vmatprep.subr.mxu0 0.0
    %144 = vmatpush2.msra.mxu0 0.0
    %145 = vmatprep.subr.mxu0 0.0
    %146 = vmatpush2.msra.mxu0 0.0
    %147 = vmatprep.subr.mxu0 0.0
    %148 = vmatpush2.msra.mxu0 0.0
    %149 = vmatprep.subr.mxu0 0.0
    %150 = vmatpush2.msra.mxu0 0.0
    %151 = vmatprep.subr.mxu0 0.0
    %152 = vmatpush2.msra.mxu0 0.0
    %153 = vmatprep.subr.mxu0 0.0
    %154 = vmatpush2.msra.mxu0 0.0
    %155 = vmatprep.subr.mxu0 0.0
    %156 = vmatpush2.msra.mxu0 0.0
    %157 = vmatprep.subr.mxu0 0.0
    %158 = vmatpush2.msra.mxu0 0.0
    %159 = vmatprep.subr.mxu0 0.0
    %160 = vmatpush2.msra.mxu0 0.0
    %161 = vmatprep.subr.mxu0 0.0
    %162 = vmatpush2.msra.mxu0 0.0
    %163 = vmatprep.subr.mxu0 0.0
    %164 = vmatpush2.msra.mxu0 0.0
    %165 = vmatprep.subr.mxu0 0.0
    %166 = vmatpush2.msra.mxu0 0.0
    %167 = vmatprep.subr.mxu0 0.0
    %168 = vmatpush2.msra.mxu0 0.0
    %169 = vmatprep.subr.mxu0 0.0
    %170 = vmatpush2.msra.mxu0 0.0
    %171 = vmatprep.subr.mxu0 0.0
    %172 = vmatpush2.msra.mxu0 0.0
    %173 = vmatprep.mubr.f32.mxu0 0.0
    %174 = vmatmul.mubr.f32.gmra.mxu0 %v73
    %v175 = vpop.f32.mrf.mxu0
    %v176 = vadd.f32 0.0, %v175
    %v177 = vpop.f32.mrf.mxu0
    %v178 = vadd.f32 0.0, %v177
    %179 = vmatprep.mubr.f32.mxu0 0.0
    %180 = vmatmul.mubr.f32.gmra.mxu0 %v76
    %v181 = vpop.f32.mrf.mxu0
    %v182 = vadd.f32 0.0, %v181
    %v183 = vpop.f32.mrf.mxu0
    %v184 = vadd.f32 0.0, %v183
    %185 = vmatprep.mubr.f32.mxu0 0.0
    %186 = vmatmul.mubr.f32.gmra.mxu0 %v79
    %v187 = vpop.f32.mrf.mxu0
    %v188 = vadd.f32 0.0, %v187
    %v189 = vpop.f32.mrf.mxu0
    %v190 = vadd.f32 0.0, %v189
    %191 = vmatprep.mubr.f32.mxu0 0.0
    %192 = vmatmul.mubr.f32.gmra.mxu0 %v82
    %v193 = vpop.f32.mrf.mxu0
    %v194 = vadd.f32 0.0, %v193
    %v195 = vpop.f32.mrf.mxu0
    %v196 = vadd.f32 0.0, %v195
    %197 = vmatprep.mubr.f32.mxu0 0.0
    %198 = vmatmul.mubr.f32.gmra.mxu0 %v85
    %v199 = vpop.f32.mrf.mxu0
    %v200 = vadd.f32 0.0, %v199
    %v201 = vpop.f32.mrf.mxu0
    %v202 = vadd.f32 0.0, %v201
    %203 = vmatprep.mubr.f32.mxu0 0.0
    %204 = vmatmul.mubr.f32.gmra.mxu0 %v88
    %v205 = vpop.f32.mrf.mxu0
    %v206 = vadd.f32 0.0, %v205
    %v207 = vpop.f32.mrf.mxu0
    %v208 = vadd.f32 0.0, %v207
    %209 = vmatprep.mubr.f32.mxu0 0.0
    %210 = vmatmul.mubr.f32.gmra.mxu0 %v91
    %v211 = vpop.f32.mrf.mxu0
    %v212 = vadd.f32 0.0, %v211
    %v213 = vpop.f32.mrf.mxu0
    %v214 = vadd.f32 0.0, %v213
    %215 = vmatprep.mubr.f32.mxu0 0.0
    %216 = vmatmul.mubr.f32.gmra.mxu0 %v94
    %v217 = vpop.f32.mrf.mxu0
    %v218 = vadd.f32 0.0, %v217
    %v219 = vpop.f32.mrf.mxu0
    %v220 = vadd.f32 0.0, %v219
    %221 = vdwg.mxu0
    %222 = vmatprep.subr.mxu0 0.0
    %223 = vmatpush1.msra.mxu0 0.0
    %224 = vmatprep.subr.mxu0 0.0
    %225 = vmatpush1.msra.mxu0 0.0
    %226 = vmatprep.subr.mxu0 0.0
    %227 = vmatpush1.msra.mxu0 0.0
    %228 = vmatprep.subr.mxu0 0.0
    %229 = vmatpush1.msra.mxu0 0.0
    %230 = vmatprep.subr.mxu0 0.0
    %231 = vmatpush1.msra.mxu0 0.0
    %232 = vmatprep.subr.mxu0 0.0
    %233 = vmatpush1.msra.mxu0 0.0
    %234 = vmatprep.subr.mxu0 0.0
    %235 = vmatpush1.msra.mxu0 0.0
    %236 = vmatprep.subr.mxu0 0.0
    %237 = vmatpush1.msra.mxu0 0.0
    %238 = vmatprep.subr.mxu0 0.0
    %239 = vmatpush1.msra.mxu0 0.0
    %240 = vmatprep.subr.mxu0 0.0
    %241 = vmatpush1.msra.mxu0 0.0
    %242 = vmatprep.subr.mxu0 0.0
    %243 = vmatpush1.msra.mxu0 0.0
    %244 = vmatprep.subr.mxu0 0.0
    %245 = vmatpush1.msra.mxu0 0.0
    %246 = vmatprep.subr.mxu0 0.0
    %247 = vmatpush1.msra.mxu0 0.0
    %248 = vmatprep.subr.mxu0 %v107
    %249 = vmatpush1.msra.mxu0 %v104
    %250 = vmatprep.subr.mxu0 %v66
    %251 = vmatpush1.msra.mxu0 %v65
    %252 = vmatprep.subr.mxu0 %v62
    %253 = vmatpush1.msra.mxu0 %v61
    %254 = vmatprep.subr.mxu0 0.0
    %255 = vmatpush2.msra.mxu0 0.0
    %256 = vmatprep.subr.mxu0 0.0
    %257 = vmatpush2.msra.mxu0 0.0
    %258 = vmatprep.subr.mxu0 0.0
    %259 = vmatpush2.msra.mxu0 0.0
    %260 = vmatprep.subr.mxu0 0.0
    %261 = vmatpush2.msra.mxu0 0.0
    %262 = vmatprep.subr.mxu0 0.0
    %263 = vmatpush2.msra.mxu0 0.0
    %264 = vmatprep.subr.mxu0 0.0
    %265 = vmatpush2.msra.mxu0 0.0
    %266 = vmatprep.subr.mxu0 0.0
    %267 = vmatpush2.msra.mxu0 0.0
    %268 = vmatprep.subr.mxu0 0.0
    %269 = vmatpush2.msra.mxu0 0.0
    %270 = vmatprep.subr.mxu0 0.0
    %271 = vmatpush2.msra.mxu0 0.0
    %272 = vmatprep.subr.mxu0 0.0
    %273 = vmatpush2.msra.mxu0 0.0
    %274 = vmatprep.subr.mxu0 0.0
    %275 = vmatpush2.msra.mxu0 0.0
    %276 = vmatprep.subr.mxu0 0.0
    %277 = vmatpush2.msra.mxu0 0.0
    %278 = vmatprep.subr.mxu0 0.0
    %279 = vmatpush2.msra.mxu0 0.0
    %280 = vmatprep.subr.mxu0 0.0
    %281 = vmatpush2.msra.mxu0 0.0
    %282 = vmatprep.subr.mxu0 0.0
    %283 = vmatpush2.msra.mxu0 0.0
    %284 = vmatprep.subr.mxu0 0.0
    %285 = vmatpush2.msra.mxu0 0.0
    %286 = vmatprep.mubr.f32.mxu0 0.0
    %287 = vmatmul.mubr.f32.gmra.mxu0 %v73
    %v288 = vpop.f32.mrf.mxu0
    %v289 = vadd.f32 0.0, %v288
    %v290 = vpop.f32.mrf.mxu0
    %v291 = vadd.f32 0.0, %v290
    %292 = vmatprep.mubr.f32.mxu0 0.0
    %293 = vmatmul.mubr.f32.gmra.mxu0 %v76
    %v294 = vpop.f32.mrf.mxu0
    %v295 = vadd.f32 0.0, %v294
    %v296 = vpop.f32.mrf.mxu0
    %v297 = vadd.f32 0.0, %v296
    %298 = vmatprep.mubr.f32.mxu0 0.0
    %299 = vmatmul.mubr.f32.gmra.mxu0 %v79
    %v300 = vpop.f32.mrf.mxu0
    %v301 = vadd.f32 0.0, %v300
    %v302 = vpop.f32.mrf.mxu0
    %v303 = vadd.f32 0.0, %v302
    %304 = vmatprep.mubr.f32.mxu0 0.0
    %305 = vmatmul.mubr.f32.gmra.mxu0 %v82
    %v306 = vpop.f32.mrf.mxu0
    %v307 = vadd.f32 0.0, %v306
    %v308 = vpop.f32.mrf.mxu0
    %v309 = vadd.f32 0.0, %v308
    %310 = vmatprep.mubr.f32.mxu0 0.0
    %311 = vmatmul.mubr.f32.gmra.mxu0 %v85
    %v312 = vpop.f32.mrf.mxu0
    %v313 = vadd.f32 0.0, %v312
    %v314 = vpop.f32.mrf.mxu0
    %v315 = vadd.f32 0.0, %v314
    %316 = vmatprep.mubr.f32.mxu0 0.0
    %317 = vmatmul.mubr.f32.gmra.mxu0 %v88
    %v318 = vpop.f32.mrf.mxu0
    %v319 = vadd.f32 0.0, %v318
    %v320 = vpop.f32.mrf.mxu0
    %v321 = vadd.f32 0.0, %v320
    %322 = vmatprep.mubr.f32.mxu0 0.0
    %323 = vmatmul.mubr.f32.gmra.mxu0 %v91
    %v324 = vpop.f32.mrf.mxu0
    %v325 = vadd.f32 0.0, %v324
    %v326 = vpop.f32.mrf.mxu0
    %v327 = vadd.f32 0.0, %v326
    %328 = vmatprep.mubr.f32.mxu0 0.0
    %329 = vmatmul.mubr.f32.gmra.mxu0 %v94
    %v330 = vpop.f32.mrf.mxu0
    %v331 = vadd.f32 0.0, %v330
    %v332 = vpop.f32.mrf.mxu0
    %v333 = vadd.f32 0.0, %v332
    %334 = vdwg.mxu0
    %335 = vst [vmem:[#allocation2] sm:$0xff] %v176
    %336 = vst [vmem:[#allocation2 + $0x8] sm:$0xff] %v178
    %337 = vst [vmem:[#allocation2 + $0x10] sm:$0xff] %v289
    %338 = vst [vmem:[#allocation2 + $0x18] sm:$0xff] %v291
    %339 = vst [vmem:[#allocation2 + $0x20] sm:$0xff] %v182
    %340 = vst [vmem:[#allocation2 + $0x28] sm:$0xff] %v184
    %341 = vst [vmem:[#allocation2 + $0x30] sm:$0xff] %v295
    %342 = vst [vmem:[#allocation2 + $0x38] sm:$0xff] %v297
    %343 = vst [vmem:[#allocation2 + $0x40] sm:$0xff] %v188
    %344 = vst [vmem:[#allocation2 + $0x48] sm:$0xff] %v190
    %345 = vst [vmem:[#allocation2 + $0x50] sm:$0xff] %v301
    %346 = vst [vmem:[#allocation2 + $0x58] sm:$0xff] %v303
    %347 = vst [vmem:[#allocation2 + $0x60] sm:$0xff] %v194
    %348 = vst [vmem:[#allocation2 + $0x68] sm:$0xff] %v196
    %349 = vst [vmem:[#allocation2 + $0x70] sm:$0xff] %v307
    %350 = vst [vmem:[#allocation2 + $0x78] sm:$0xff] %v309
    %351 = vst [vmem:[#allocation2 + $0x80] sm:$0xff] %v200
    %352 = vst [vmem:[#allocation2 + $0x88] sm:$0xff] %v202
    %353 = vst [vmem:[#allocation2 + $0x90] sm:$0xff] %v313
    %354 = vst [vmem:[#allocation2 + $0x98] sm:$0xff] %v315
    %355 = vst [vmem:[#allocation2 + $0xa0] sm:$0xff] %v206
    %356 = vst [vmem:[#allocation2 + $0xa8] sm:$0xff] %v208
    %357 = vst [vmem:[#allocation2 + $0xb0] sm:$0xff] %v319
    %358 = vst [vmem:[#allocation2 + $0xb8] sm:$0xff] %v321
    %359 = vst [vmem:[#allocation2 + $0xc0] sm:$0xff] %v212
    %360 = vst [vmem:[#allocation2 + $0xc8] sm:$0xff] %v214
    %361 = vst [vmem:[#allocation2 + $0xd0] sm:$0xff] %v325
    %362 = vst [vmem:[#allocation2 + $0xd8] sm:$0xff] %v327
    %363 = vst [vmem:[#allocation2 + $0xe0] sm:$0xff] %v218
    %364 = vst [vmem:[#allocation2 + $0xe8] sm:$0xff] %v220
    %365 = vst [vmem:[#allocation2 + $0xf0] sm:$0xff] %v331
    %366 = vst [vmem:[#allocation2 + $0xf8] sm:$0xff] %v333
    %v367 = vld [vmem:[#allocation3] sm:$0xff]
    %v368 = vld [vmem:[#allocation3 + $0x8] sm:$0xff]
    %v369 = vld [vmem:[#allocation3 + $0x10] sm:$0xff]
    %v370 = vld [vmem:[#allocation3 + $0x18] sm:$0xff]
    %v371 = vld [vmem:[#allocation3 + $0x20] sm:$0xff]
    %v372 = vld [vmem:[#allocation3 + $0x28] sm:$0xff]
    %v373 = vld [vmem:[#allocation3 + $0x30] sm:$0xff]
    %v374 = vld [vmem:[#allocation3 + $0x38] sm:$0xff]
    %v375 = vld [vmem:[#allocation3 + $0x40] sm:$0xff]
    %v376 = vld [vmem:[#allocation3 + $0x48] sm:$0xff]
    %v377 = vld [vmem:[#allocation3 + $0x50] sm:$0xff]
    %v378 = vld [vmem:[#allocation3 + $0x58] sm:$0xff]
    %v379 = vld [vmem:[#allocation3 + $0x60] sm:$0xff]
    %v380 = vld [vmem:[#allocation3 + $0x68] sm:$0xff]
    %v381 = vld [vmem:[#allocation3 + $0x70] sm:$0xff]
    %v382 = vld [vmem:[#allocation3 + $0x78] sm:$0xff]
    %v383 = vld [vmem:[#allocation3 + $0x80] sm:$0xff]
    %v384 = vld [vmem:[#allocation3 + $0x88] sm:$0xff]
    %v385 = vld [vmem:[#allocation3 + $0x90] sm:$0xff]
    %v386 = vld [vmem:[#allocation3 + $0x98] sm:$0xff]
    %v387 = vld [vmem:[#allocation3 + $0xa0] sm:$0xff]
    %v388 = vld [vmem:[#allocation3 + $0xa8] sm:$0xff]
    %v389 = vld [vmem:[#allocation3 + $0xb0] sm:$0xff]
    %v390 = vld [vmem:[#allocation3 + $0xb8] sm:$0xff]
    %v391 = vld [vmem:[#allocation3 + $0xc0] sm:$0xff]
    %v392 = vld [vmem:[#allocation3 + $0xc8] sm:$0xff]
    %v393 = vld [vmem:[#allocation3 + $0xd0] sm:$0xff]
    %v394 = vld [vmem:[#allocation3 + $0xd8] sm:$0xff]
    %v395 = vld [vmem:[#allocation3 + $0xe0] sm:$0xff]
    %v396 = vld [vmem:[#allocation3 + $0xe8] sm:$0xff]
    %v397 = vld [vmem:[#allocation3 + $0xf0] sm:$0xff]
    %v398 = vld [vmem:[#allocation3 + $0xf8] sm:$0xff]
    %v399 = vld [vmem:[#allocation3 + $0x100] sm:$0xff]
    %v400 = vld [vmem:[#allocation3 + $0x108] sm:$0xff]
    %v401 = vld [vmem:[#allocation3 + $0x110] sm:$0xff]
    %v402 = vld [vmem:[#allocation3 + $0x118] sm:$0xff]
    %v403 = vld [vmem:[#allocation3 + $0x120] sm:$0xff]
    %v404 = vld [vmem:[#allocation3 + $0x128] sm:$0xff]
    %v405 = vld [vmem:[#allocation3 + $0x130] sm:$0xff]
    %v406 = vld [vmem:[#allocation3 + $0x138] sm:$0xff]
    %v407 = vld [vmem:[#allocation3 + $0x140] sm:$0xff]
    %v408 = vld [vmem:[#allocation3 + $0x148] sm:$0xff]
    %v409 = vld [vmem:[#allocation3 + $0x150] sm:$0xff]
    %v410 = vld [vmem:[#allocation3 + $0x158] sm:$0xff]
    %v411 = vld [vmem:[#allocation3 + $0x160] sm:$0xff]
    %v412 = vld [vmem:[#allocation3 + $0x168] sm:$0xff]
    %v413 = vld [vmem:[#allocation3 + $0x170] sm:$0xff]
    %v414 = vld [vmem:[#allocation3 + $0x178] sm:$0xff]
    %v415 = vld [vmem:[#allocation3 + $0x180] sm:$0xff]
    %v416 = vld [vmem:[#allocation3 + $0x188] sm:$0xff]
    %v417 = vld [vmem:[#allocation3 + $0x190] sm:$0xff]
    %v418 = vld [vmem:[#allocation3 + $0x198] sm:$0xff]
    %v419 = vld [vmem:[#allocation3 + $0x1a0] sm:$0xff]
    %v420 = vld [vmem:[#allocation3 + $0x1a8] sm:$0xff]
    %v421 = vld [vmem:[#allocation3 + $0x1b0] sm:$0xff]
    %v422 = vld [vmem:[#allocation3 + $0x1b8] sm:$0xff]
    %v423 = vld [vmem:[#allocation3 + $0x1c0] sm:$0xff]
    %v424 = vld [vmem:[#allocation3 + $0x1c8] sm:$0xff]
    %v425 = vld [vmem:[#allocation3 + $0x1d0] sm:$0xff]
    %v426 = vld [vmem:[#allocation3 + $0x1d8] sm:$0xff]
    %v427 = vld [vmem:[#allocation3 + $0x1e0] sm:$0xff]
    %v428 = vld [vmem:[#allocation3 + $0x1e8] sm:$0xff]
    %v429 = vld [vmem:[#allocation3 + $0x1f0] sm:$0xff]
    %v430 = vld [vmem:[#allocation3 + $0x1f8] sm:$0xff]
    %v431 = vld [vmem:[%s3] sm:$0xf]
    %v432 = vld [vmem:[#allocation2] sm:$0xff]
    %v433 = vld [vmem:[#allocation2 + $0x8] sm:$0xff]
    %v434 = vld [vmem:[#allocation2 + $0x10] sm:$0xff]
    %v435 = vld [vmem:[#allocation2 + $0x18] sm:$0xff]
    %436 = vmatprep.subr.mxu0 %v428
    %437 = vmatpush1.msra.mxu0 %v427
    %438 = vmatprep.subr.mxu0 %v424
    %439 = vmatpush1.msra.mxu0 %v423
    %440 = vmatprep.subr.mxu0 %v420
    %441 = vmatpush1.msra.mxu0 %v419
    %442 = vmatprep.subr.mxu0 %v416
    %443 = vmatpush1.msra.mxu0 %v415
    %444 = vmatprep.subr.mxu0 %v412
    %445 = vmatpush1.msra.mxu0 %v411
    %446 = vmatprep.subr.mxu0 %v408
    %447 = vmatpush1.msra.mxu0 %v407
    %448 = vmatprep.subr.mxu0 %v404
    %449 = vmatpush1.msra.mxu0 %v403
    %450 = vmatprep.subr.mxu0 %v400
    %451 = vmatpush1.msra.mxu0 %v399
    %452 = vmatprep.subr.mxu0 %v396
    %453 = vmatpush1.msra.mxu0 %v395
    %454 = vmatprep.subr.mxu0 %v392
    %455 = vmatpush1.msra.mxu0 %v391
    %456 = vmatprep.subr.mxu0 %v388
    %457 = vmatpush1.msra.mxu0 %v387
    %458 = vmatprep.subr.mxu0 %v384
    %459 = vmatpush1.msra.mxu0 %v383
    %460 = vmatprep.subr.mxu0 %v380
    %461 = vmatpush1.msra.mxu0 %v379
    %462 = vmatprep.subr.mxu0 %v376
    %463 = vmatpush1.msra.mxu0 %v375
    %464 = vmatprep.subr.mxu0 %v372
    %465 = vmatpush1.msra.mxu0 %v371
    %466 = vmatprep.subr.mxu0 %v368
    %467 = vmatpush1.msra.mxu0 %v367
    %468 = vmatprep.subr.mxu0 0.0
    %469 = vmatpush2.msra.mxu0 0.0
    %470 = vmatprep.subr.mxu0 0.0
    %471 = vmatpush2.msra.mxu0 0.0
    %472 = vmatprep.subr.mxu0 0.0
    %473 = vmatpush2.msra.mxu0 0.0
    %474 = vmatprep.subr.mxu0 0.0
    %475 = vmatpush2.msra.mxu0 0.0
    %476 = vmatprep.subr.mxu0 0.0
    %477 = vmatpush2.msra.mxu0 0.0
    %478 = vmatprep.subr.mxu0 0.0
    %479 = vmatpush2.msra.mxu0 0.0
    %480 = vmatprep.subr.mxu0 0.0
    %481 = vmatpush2.msra.mxu0 0.0
    %482 = vmatprep.subr.mxu0 0.0
    %483 = vmatpush2.msra.mxu0 0.0
    %484 = vmatprep.subr.mxu0 0.0
    %485 = vmatpush2.msra.mxu0 0.0
    %486 = vmatprep.subr.mxu0 0.0
    %487 = vmatpush2.msra.mxu0 0.0
    %488 = vmatprep.subr.mxu0 0.0
    %489 = vmatpush2.msra.mxu0 0.0
    %490 = vmatprep.subr.mxu0 0.0
    %491 = vmatpush2.msra.mxu0 0.0
    %492 = vmatprep.subr.mxu0 0.0
    %493 = vmatpush2.msra.mxu0 0.0
    %494 = vmatprep.subr.mxu0 0.0
    %495 = vmatpush2.msra.mxu0 0.0
    %496 = vmatprep.subr.mxu0 0.0
    %497 = vmatpush2.msra.mxu0 0.0
    %498 = vmatprep.subr.mxu0 0.0
    %499 = vmatpush2.msra.mxu0 0.0
    %500 = vmatprep.mubr.f32.mxu0 0.0
    %501 = vmatmul.mubr.f32.gmra.mxu0 0.0
    %v502 = vpop.f32.mrf.mxu0
    %v503 = vadd.f32 0.0, %v502
    %v504 = vpop.f32.mrf.mxu0
    %v505 = vadd.f32 0.0, %v504
    %506 = vdwg.mxu0
    %507 = vmatprep.subr.mxu0 %v430
    %508 = vmatpush1.msra.mxu0 %v429
    %509 = vmatprep.subr.mxu0 %v426
    %510 = vmatpush1.msra.mxu0 %v425
    %511 = vmatprep.subr.mxu0 %v422
    %512 = vmatpush1.msra.mxu0 %v421
    %513 = vmatprep.subr.mxu0 %v418
    %514 = vmatpush1.msra.mxu0 %v417
    %515 = vmatprep.subr.mxu0 %v414
    %516 = vmatpush1.msra.mxu0 %v413
    %517 = vmatprep.subr.mxu0 %v410
    %518 = vmatpush1.msra.mxu0 %v409
    %519 = vmatprep.subr.mxu0 %v406
    %520 = vmatpush1.msra.mxu0 %v405
    %521 = vmatprep.subr.mxu0 %v402
    %522 = vmatpush1.msra.mxu0 %v401
    %523 = vmatprep.subr.mxu0 %v398
    %524 = vmatpush1.msra.mxu0 %v397
    %525 = vmatprep.subr.mxu0 %v394
    %526 = vmatpush1.msra.mxu0 %v393
    %527 = vmatprep.subr.mxu0 %v390
    %528 = vmatpush1.msra.mxu0 %v389
    %529 = vmatprep.subr.mxu0 %v386
    %530 = vmatpush1.msra.mxu0 %v385
    %531 = vmatprep.subr.mxu0 %v382
    %532 = vmatpush1.msra.mxu0 %v381
    %533 = vmatprep.subr.mxu0 %v378
    %534 = vmatpush1.msra.mxu0 %v377
    %535 = vmatprep.subr.mxu0 %v374
    %536 = vmatpush1.msra.mxu0 %v373
    %537 = vmatprep.subr.mxu0 %v370
    %538 = vmatpush1.msra.mxu0 %v369
    %539 = vmatprep.subr.mxu0 0.0
    %540 = vmatpush2.msra.mxu0 0.0
    %541 = vmatprep.subr.mxu0 0.0
    %542 = vmatpush2.msra.mxu0 0.0
    %543 = vmatprep.subr.mxu0 0.0
    %544 = vmatpush2.msra.mxu0 0.0
    %545 = vmatprep.subr.mxu0 0.0
    %546 = vmatpush2.msra.mxu0 0.0
    %547 = vmatprep.subr.mxu0 0.0
    %548 = vmatpush2.msra.mxu0 0.0
    %549 = vmatprep.subr.mxu0 0.0
    %550 = vmatpush2.msra.mxu0 0.0
    %551 = vmatprep.subr.mxu0 0.0
    %552 = vmatpush2.msra.mxu0 0.0
    %553 = vmatprep.subr.mxu0 0.0
    %554 = vmatpush2.msra.mxu0 0.0
    %555 = vmatprep.subr.mxu0 0.0
    %556 = vmatpush2.msra.mxu0 0.0
    %557 = vmatprep.subr.mxu0 0.0
    %558 = vmatpush2.msra.mxu0 0.0
    %559 = vmatprep.subr.mxu0 0.0
    %560 = vmatpush2.msra.mxu0 0.0
    %561 = vmatprep.subr.mxu0 0.0
    %562 = vmatpush2.msra.mxu0 0.0
    %563 = vmatprep.subr.mxu0 0.0
    %564 = vmatpush2.msra.mxu0 0.0
    %565 = vmatprep.subr.mxu0 0.0
    %566 = vmatpush2.msra.mxu0 0.0
    %567 = vmatprep.subr.mxu0 0.0
    %568 = vmatpush2.msra.mxu0 0.0
    %569 = vmatprep.subr.mxu0 0.0
    %570 = vmatpush2.msra.mxu0 0.0
    %571 = vmatprep.mubr.f32.mxu0 0.0
    %572 = vmatmul.mubr.f32.gmra.mxu0 0.0
    %v573 = vpop.f32.mrf.mxu0
    %v574 = vadd.f32 0.0, %v573
    %v575 = vpop.f32.mrf.mxu0
    %v576 = vadd.f32 0.0, %v575
    %577 = vdwg.mxu0
    %v578 = vadd.f32 %v432, %v503
    %v579 = vadd.f32 %v433, %v505
    %v580 = vadd.f32 %v434, %v574
    %v581 = vadd.f32 %v435, %v576
    %v583 = vlaneseq
    %v584 = vshrl.u32 %v583, 7
    %v585 = vsub.s32 0, %v584
    %v586 = vrot.slane %v431, %v585
    %v587 = vlaneseq
    %v588 = vshrl.u32 %v587, 7
    %v589 = vsub.s32 1, %v588
    %v590 = vrot.slane %v431, %v589
    %v591 = vlaneseq
    %v592 = vshrl.u32 %v591, 7
    %v593 = vsub.s32 2, %v592
    %v594 = vrot.slane %v431, %v593
    %v595 = vlaneseq
    %v596 = vshrl.u32 %v595, 7
    %v597 = vsub.s32 3, %v596
    %v598 = vrot.slane %v431, %v597
    %v603 = vadd.f32 %v578, %v586
    %v604 = vadd.f32 %v579, %v590
    %v605 = vadd.f32 %v580, %v594
    %v606 = vadd.f32 %v581, %v598
    %v607 = vxor.u32 %v603, 2147483648
    %v608 = vmul.f32 %v607, 1.442695
    %v609 = vpow.pop %v608
    %v610 = vadd.f32 %v609, 1.0
    %v611 = vrcp.pop %v610
    %v612 = vmul.f32 1.0, %v611
    %v613 = vxor.u32 %v604, 2147483648
    %v614 = vmul.f32 %v613, 1.442695
    %v615 = vpow.pop %v614
    %v616 = vadd.f32 %v615, 1.0
    %v617 = vrcp.pop %v616
    %v618 = vmul.f32 1.0, %v617
    %v619 = vtanh.pop %v605
    %v620 = vxor.u32 %v606, 2147483648
    %v621 = vmul.f32 %v620, 1.442695
    %v622 = vpow.pop %v621
    %v623 = vadd.f32 %v622, 1.0
    %v624 = vrcp.pop %v623
    %v625 = vmul.f32 1.0, %v624
    %v626 = vmul.f32 %v618, 0.0
    %v627 = vmul.f32 %v612, %v619
    %v628 = vadd.f32 %v626, %v627
    %v629 = vtanh.pop %v628
    %v630 = vmul.f32 %v625, %v629
    %v631 = vld [vmem:[#allocation2 + $0x20] sm:$0xff]
    %v632 = vld [vmem:[#allocation2 + $0x28] sm:$0xff]
    %v633 = vld [vmem:[#allocation2 + $0x30] sm:$0xff]
    %v634 = vld [vmem:[#allocation2 + $0x38] sm:$0xff]
    %635 = vmatprep.subr.mxu0 %v428
    %636 = vmatpush1.msra.mxu0 %v427
    %637 = vmatprep.subr.mxu0 %v424
    %638 = vmatpush1.msra.mxu0 %v423
    %639 = vmatprep.subr.mxu0 %v420
    %640 = vmatpush1.msra.mxu0 %v419
    %641 = vmatprep.subr.mxu0 %v416
    %642 = vmatpush1.msra.mxu0 %v415
    %643 = vmatprep.subr.mxu0 %v412
    %644 = vmatpush1.msra.mxu0 %v411
    %645 = vmatprep.subr.mxu0 %v408
    %646 = vmatpush1.msra.mxu0 %v407
    %647 = vmatprep.subr.mxu0 %v404
    %648 = vmatpush1.msra.mxu0 %v403
    %649 = vmatprep.subr.mxu0 %v400
    %650 = vmatpush1.msra.mxu0 %v399
    %651 = vmatprep.subr.mxu0 %v396
    %652 = vmatpush1.msra.mxu0 %v395
    %653 = vmatprep.subr.mxu0 %v392
    %654 = vmatpush1.msra.mxu0 %v391
    %655 = vmatprep.subr.mxu0 %v388
    %656 = vmatpush1.msra.mxu0 %v387
    %657 = vmatprep.subr.mxu0 %v384
    %658 = vmatpush1.msra.mxu0 %v383
    %659 = vmatprep.subr.mxu0 %v380
    %660 = vmatpush1.msra.mxu0 %v379
    %661 = vmatprep.subr.mxu0 %v376
    %662 = vmatpush1.msra.mxu0 %v375
    %663 = vmatprep.subr.mxu0 %v372
    %664 = vmatpush1.msra.mxu0 %v371
    %665 = vmatprep.subr.mxu0 %v368
    %666 = vmatpush1.msra.mxu0 %v367
    %667 = vmatprep.subr.mxu0 0.0
    %668 = vmatpush2.msra.mxu0 0.0
    %669 = vmatprep.subr.mxu0 0.0
    %670 = vmatpush2.msra.mxu0 0.0
    %671 = vmatprep.subr.mxu0 0.0
    %672 = vmatpush2.msra.mxu0 0.0
    %673 = vmatprep.subr.mxu0 0.0
    %674 = vmatpush2.msra.mxu0 0.0
    %675 = vmatprep.subr.mxu0 0.0
    %676 = vmatpush2.msra.mxu0 0.0
    %677 = vmatprep.subr.mxu0 0.0
    %678 = vmatpush2.msra.mxu0 0.0
    %679 = vmatprep.subr.mxu0 0.0
    %680 = vmatpush2.msra.mxu0 0.0
    %681 = vmatprep.subr.mxu0 0.0
    %682 = vmatpush2.msra.mxu0 0.0
    %683 = vmatprep.subr.mxu0 0.0
    %684 = vmatpush2.msra.mxu0 0.0
    %685 = vmatprep.subr.mxu0 0.0
    %686 = vmatpush2.msra.mxu0 0.0
    %687 = vmatprep.subr.mxu0 0.0
    %688 = vmatpush2.msra.mxu0 0.0
    %689 = vmatprep.subr.mxu0 0.0
    %690 = vmatpush2.msra.mxu0 0.0
    %691 = vmatprep.subr.mxu0 0.0
    %692 = vmatpush2.msra.mxu0 0.0
    %693 = vmatprep.subr.mxu0 0.0
    %694 = vmatpush2.msra.mxu0 0.0
    %695 = vmatprep.subr.mxu0 0.0
    %696 = vmatpush2.msra.mxu0 0.0
    %697 = vmatprep.subr.mxu0 0.0
    %698 = vmatpush2.msra.mxu0 0.0
    %699 = vmatprep.mubr.f32.mxu0 0.0
    %700 = vmatmul.mubr.f32.gmra.mxu0 %v630
    %v701 = vpop.f32.mrf.mxu0
    %v702 = vadd.f32 0.0, %v701
    %v703 = vpop.f32.mrf.mxu0
    %v704 = vadd.f32 0.0, %v703
    %705 = vdwg.mxu0
    %706 = vmatprep.subr.mxu0 %v430
    %707 = vmatpush1.msra.mxu0 %v429
    %708 = vmatprep.subr.mxu0 %v426
    %709 = vmatpush1.msra.mxu0 %v425
    %710 = vmatprep.subr.mxu0 %v422
    %711 = vmatpush1.msra.mxu0 %v421
    %712 = vmatprep.subr.mxu0 %v418
    %713 = vmatpush1.msra.mxu0 %v417
    %714 = vmatprep.subr.mxu0 %v414
    %715 = vmatpush1.msra.mxu0 %v413
    %716 = vmatprep.subr.mxu0 %v410
    %717 = vmatpush1.msra.mxu0 %v409
    %718 = vmatprep.subr.mxu0 %v406
    %719 = vmatpush1.msra.mxu0 %v405
    %720 = vmatprep.subr.mxu0 %v402
    %721 = vmatpush1.msra.mxu0 %v401
    %722 = vmatprep.subr.mxu0 %v398
    %723 = vmatpush1.msra.mxu0 %v397
    %724 = vmatprep.subr.mxu0 %v394
    %725 = vmatpush1.msra.mxu0 %v393
    %726 = vmatprep.subr.mxu0 %v390
    %727 = vmatpush1.msra.mxu0 %v389
    %728 = vmatprep.subr.mxu0 %v386
    %729 = vmatpush1.msra.mxu0 %v385
    %730 = vmatprep.subr.mxu0 %v382
    %731 = vmatpush1.msra.mxu0 %v381
    %732 = vmatprep.subr.mxu0 %v378
    %733 = vmatpush1.msra.mxu0 %v377
    %734 = vmatprep.subr.mxu0 %v374
    %735 = vmatpush1.msra.mxu0 %v373
    %736 = vmatprep.subr.mxu0 %v370
    %737 = vmatpush1.msra.mxu0 %v369
    %738 = vmatprep.subr.mxu0 0.0
    %739 = vmatpush2.msra.mxu0 0.0
    %740 = vmatprep.subr.mxu0 0.0
    %741 = vmatpush2.msra.mxu0 0.0
    %742 = vmatprep.subr.mxu0 0.0
    %743 = vmatpush2.msra.mxu0 0.0
    %744 = vmatprep.subr.mxu0 0.0
    %745 = vmatpush2.msra.mxu0 0.0
    %746 = vmatprep.subr.mxu0 0.0
    %747 = vmatpush2.msra.mxu0 0.0
    %748 = vmatprep.subr.mxu0 0.0
    %749 = vmatpush2.msra.mxu0 0.0
    %750 = vmatprep.subr.mxu0 0.0
    %751 = vmatpush2.msra.mxu0 0.0
    %752 = vmatprep.subr.mxu0 0.0
    %753 = vmatpush2.msra.mxu0 0.0
    %754 = vmatprep.subr.mxu0 0.0
    %755 = vmatpush2.msra.mxu0 0.0
    %756 = vmatprep.subr.mxu0 0.0
    %757 = vmatpush2.msra.mxu0 0.0
    %758 = vmatprep.subr.mxu0 0.0
    %759 = vmatpush2.msra.mxu0 0.0
    %760 = vmatprep.subr.mxu0 0.0
    %761 = vmatpush2.msra.mxu0 0.0
    %762 = vmatprep.subr.mxu0 0.0
    %763 = vmatpush2.msra.mxu0 0.0
    %764 = vmatprep.subr.mxu0 0.0
    %765 = vmatpush2.msra.mxu0 0.0
    %766 = vmatprep.subr.mxu0 0.0
    %767 = vmatpush2.msra.mxu0 0.0
    %768 = vmatprep.subr.mxu0 0.0
    %769 = vmatpush2.msra.mxu0 0.0
    %770 = vmatprep.mubr.f32.mxu0 0.0
    %771 = vmatmul.mubr.f32.gmra.mxu0 %v630
    %v772 = vpop.f32.mrf.mxu0
    %v773 = vadd.f32 0.0, %v772
    %v774 = vpop.f32.mrf.mxu0
    %v775 = vadd.f32 0.0, %v774
    %776 = vdwg.mxu0
    %v777 = vadd.f32 %v631, %v702
    %v778 = vadd.f32 %v632, %v704
    %v779 = vadd.f32 %v633, %v773
    %v780 = vadd.f32 %v634, %v775
    %v781 = vadd.f32 %v777, %v586
    %v782 = vadd.f32 %v778, %v590
    %v783 = vadd.f32 %v779, %v594
    %v784 = vadd.f32 %v780, %v598
    %v785 = vxor.u32 %v781, 2147483648
    %v786 = vmul.f32 %v785, 1.442695
    %v787 = vpow.pop %v786
    %v788 = vadd.f32 %v787, 1.0
    %v789 = vrcp.pop %v788
    %v790 = vmul.f32 1.0, %v789
    %v791 = vxor.u32 %v782, 2147483648
    %v792 = vmul.f32 %v791, 1.442695
    %v793 = vpow.pop %v792
    %v794 = vadd.f32 %v793, 1.0
    %v795 = vrcp.pop %v794
    %v796 = vmul.f32 1.0, %v795
    %v797 = vtanh.pop %v783
    %v798 = vxor.u32 %v784, 2147483648
    %v799 = vmul.f32 %v798, 1.442695
    %v800 = vpow.pop %v799
    %v801 = vadd.f32 %v800, 1.0
    %v802 = vrcp.pop %v801
    %v803 = vmul.f32 1.0, %v802
    %v804 = vmul.f32 %v796, %v628
    %v805 = vmul.f32 %v790, %v797
    %v806 = vadd.f32 %v804, %v805
    %v807 = vtanh.pop %v806
    %v808 = vmul.f32 %v803, %v807
    %v809 = vld [vmem:[#allocation2 + $0x40] sm:$0xff]
    %v810 = vld [vmem:[#allocation2 + $0x48] sm:$0xff]
    %v811 = vld [vmem:[#allocation2 + $0x50] sm:$0xff]
    %v812 = vld [vmem:[#allocation2 + $0x58] sm:$0xff]
    %813 = vmatprep.subr.mxu0 %v428
    %814 = vmatpush1.msra.mxu0 %v427
    %815 = vmatprep.subr.mxu0 %v424
    %816 = vmatpush1.msra.mxu0 %v423
    %817 = vmatprep.subr.mxu0 %v420
    %818 = vmatpush1.msra.mxu0 %v419
    %819 = vmatprep.subr.mxu0 %v416
    %820 = vmatpush1.msra.mxu0 %v415
    %821 = vmatprep.subr.mxu0 %v412
    %822 = vmatpush1.msra.mxu0 %v411
    %823 = vmatprep.subr.mxu0 %v408
    %824 = vmatpush1.msra.mxu0 %v407
    %825 = vmatprep.subr.mxu0 %v404
    %826 = vmatpush1.msra.mxu0 %v403
    %827 = vmatprep.subr.mxu0 %v400
    %828 = vmatpush1.msra.mxu0 %v399
    %829 = vmatprep.subr.mxu0 %v396
    %830 = vmatpush1.msra.mxu0 %v395
    %831 = vmatprep.subr.mxu0 %v392
    %832 = vmatpush1.msra.mxu0 %v391
    %833 = vmatprep.subr.mxu0 %v388
    %834 = vmatpush1.msra.mxu0 %v387
    %835 = vmatprep.subr.mxu0 %v384
    %836 = vmatpush1.msra.mxu0 %v383
    %837 = vmatprep.subr.mxu0 %v380
    %838 = vmatpush1.msra.mxu0 %v379
    %839 = vmatprep.subr.mxu0 %v376
    %840 = vmatpush1.msra.mxu0 %v375
    %841 = vmatprep.subr.mxu0 %v372
    %842 = vmatpush1.msra.mxu0 %v371
    %843 = vmatprep.subr.mxu0 %v368
    %844 = vmatpush1.msra.mxu0 %v367
    %845 = vmatprep.subr.mxu0 0.0
    %846 = vmatpush2.msra.mxu0 0.0
    %847 = vmatprep.subr.mxu0 0.0
    %848 = vmatpush2.msra.mxu0 0.0
    %849 = vmatprep.subr.mxu0 0.0
    %850 = vmatpush2.msra.mxu0 0.0
    %851 = vmatprep.subr.mxu0 0.0
    %852 = vmatpush2.msra.mxu0 0.0
    %853 = vmatprep.subr.mxu0 0.0
    %854 = vmatpush2.msra.mxu0 0.0
    %855 = vmatprep.subr.mxu0 0.0
    %856 = vmatpush2.msra.mxu0 0.0
    %857 = vmatprep.subr.mxu0 0.0
    %858 = vmatpush2.msra.mxu0 0.0
    %859 = vmatprep.subr.mxu0 0.0
    %860 = vmatpush2.msra.mxu0 0.0
    %861 = vmatprep.subr.mxu0 0.0
    %862 = vmatpush2.msra.mxu0 0.0
    %863 = vmatprep.subr.mxu0 0.0
    %864 = vmatpush2.msra.mxu0 0.0
    %865 = vmatprep.subr.mxu0 0.0
    %866 = vmatpush2.msra.mxu0 0.0
    %867 = vmatprep.subr.mxu0 0.0
    %868 = vmatpush2.msra.mxu0 0.0
    %869 = vmatprep.subr.mxu0 0.0
    %870 = vmatpush2.msra.mxu0 0.0
    %871 = vmatprep.subr.mxu0 0.0
    %872 = vmatpush2.msra.mxu0 0.0
    %873 = vmatprep.subr.mxu0 0.0
    %874 = vmatpush2.msra.mxu0 0.0
    %875 = vmatprep.subr.mxu0 0.0
    %876 = vmatpush2.msra.mxu0 0.0
    %877 = vmatprep.mubr.f32.mxu0 0.0
    %878 = vmatmul.mubr.f32.gmra.mxu0 %v808
    %v879 = vpop.f32.mrf.mxu0
    %v880 = vadd.f32 0.0, %v879
    %v881 = vpop.f32.mrf.mxu0
    %v882 = vadd.f32 0.0, %v881
    %883 = vdwg.mxu0
    %884 = vmatprep.subr.mxu0 %v430
    %885 = vmatpush1.msra.mxu0 %v429
    %886 = vmatprep.subr.mxu0 %v426
    %887 = vmatpush1.msra.mxu0 %v425
    %888 = vmatprep.subr.mxu0 %v422
    %889 = vmatpush1.msra.mxu0 %v421
    %890 = vmatprep.subr.mxu0 %v418
    %891 = vmatpush1.msra.mxu0 %v417
    %892 = vmatprep.subr.mxu0 %v414
    %893 = vmatpush1.msra.mxu0 %v413
    %894 = vmatprep.subr.mxu0 %v410
    %895 = vmatpush1.msra.mxu0 %v409
    %896 = vmatprep.subr.mxu0 %v406
    %897 = vmatpush1.msra.mxu0 %v405
    %898 = vmatprep.subr.mxu0 %v402
    %899 = vmatpush1.msra.mxu0 %v401
    %900 = vmatprep.subr.mxu0 %v398
    %901 = vmatpush1.msra.mxu0 %v397
    %902 = vmatprep.subr.mxu0 %v394
    %903 = vmatpush1.msra.mxu0 %v393
    %904 = vmatprep.subr.mxu0 %v390
    %905 = vmatpush1.msra.mxu0 %v389
    %906 = vmatprep.subr.mxu0 %v386
    %907 = vmatpush1.msra.mxu0 %v385
    %908 = vmatprep.subr.mxu0 %v382
    %909 = vmatpush1.msra.mxu0 %v381
    %910 = vmatprep.subr.mxu0 %v378
    %911 = vmatpush1.msra.mxu0 %v377
    %912 = vmatprep.subr.mxu0 %v374
    %913 = vmatpush1.msra.mxu0 %v373
    %914 = vmatprep.subr.mxu0 %v370
    %915 = vmatpush1.msra.mxu0 %v369
    %916 = vmatprep.subr.mxu0 0.0
    %917 = vmatpush2.msra.mxu0 0.0
    %918 = vmatprep.subr.mxu0 0.0
    %919 = vmatpush2.msra.mxu0 0.0
    %920 = vmatprep.subr.mxu0 0.0
    %921 = vmatpush2.msra.mxu0 0.0
    %922 = vmatprep.subr.mxu0 0.0
    %923 = vmatpush2.msra.mxu0 0.0
    %924 = vmatprep.subr.mxu0 0.0
    %925 = vmatpush2.msra.mxu0 0.0
    %926 = vmatprep.subr.mxu0 0.0
    %927 = vmatpush2.msra.mxu0 0.0
    %928 = vmatprep.subr.mxu0 0.0
    %929 = vmatpush2.msra.mxu0 0.0
    %930 = vmatprep.subr.mxu0 0.0
    %931 = vmatpush2.msra.mxu0 0.0
    %932 = vmatprep.subr.mxu0 0.0
    %933 = vmatpush2.msra.mxu0 0.0
    %934 = vmatprep.subr.mxu0 0.0
    %935 = vmatpush2.msra.mxu0 0.0
    %936 = vmatprep.subr.mxu0 0.0
    %937 = vmatpush2.msra.mxu0 0.0
    %938 = vmatprep.subr.mxu0 0.0
    %939 = vmatpush2.msra.mxu0 0.0
    %940 = vmatprep.subr.mxu0 0.0
    %941 = vmatpush2.msra.mxu0 0.0
    %942 = vmatprep.subr.mxu0 0.0
    %943 = vmatpush2.msra.mxu0 0.0
    %944 = vmatprep.subr.mxu0 0.0
    %945 = vmatpush2.msra.mxu0 0.0
    %946 = vmatprep.subr.mxu0 0.0
    %947 = vmatpush2.msra.mxu0 0.0
    %948 = vmatprep.mubr.f32.mxu0 0.0
    %949 = vmatmul.mubr.f32.gmra.mxu0 %v808
    %v950 = vpop.f32.mrf.mxu0
    %v951 = vadd.f32 0.0, %v950
    %v952 = vpop.f32.mrf.mxu0
    %v953 = vadd.f32 0.0, %v952
    %954 = vdwg.mxu0
    %v955 = vadd.f32 %v809, %v880
    %v956 = vadd.f32 %v810, %v882
    %v957 = vadd.f32 %v811, %v951
    %v958 = vadd.f32 %v812, %v953
    %v959 = vadd.f32 %v955, %v586
    %v960 = vadd.f32 %v956, %v590
    %v961 = vadd.f32 %v957, %v594
    %v962 = vadd.f32 %v958, %v598
    %v963 = vxor.u32 %v959, 2147483648
    %v964 = vmul.f32 %v963, 1.442695
    %v965 = vpow.pop %v964
    %v966 = vadd.f32 %v965, 1.0
    %v967 = vrcp.pop %v966
    %v968 = vmul.f32 1.0, %v967
    %v969 = vxor.u32 %v960, 2147483648
    %v970 = vmul.f32 %v969, 1.442695
    %v971 = vpow.pop %v970
    %v972 = vadd.f32 %v971, 1.0
    %v973 = vrcp.pop %v972
    %v974 = vmul.f32 1.0, %v973
    %v975 = vtanh.pop %v961
    %v976 = vxor.u32 %v962, 2147483648
    %v977 = vmul.f32 %v976, 1.442695
    %v978 = vpow.pop %v977
    %v979 = vadd.f32 %v978, 1.0
    %v980 = vrcp.pop %v979
    %v981 = vmul.f32 1.0, %v980
    %v982 = vmul.f32 %v974, %v806
    %v983 = vmul.f32 %v968, %v975
    %v984 = vadd.f32 %v982, %v983
    %v985 = vtanh.pop %v984
    %v986 = vmul.f32 %v981, %v985
    %v987 = vld [vmem:[#allocation2 + $0x60] sm:$0xff]
    %v988 = vld [vmem:[#allocation2 + $0x68] sm:$0xff]
    %v989 = vld [vmem:[#allocation2 + $0x70] sm:$0xff]
    %v990 = vld [vmem:[#allocation2 + $0x78] sm:$0xff]
    %991 = vmatprep.subr.mxu0 %v428
    %992 = vmatpush1.msra.mxu0 %v427
    %993 = vmatprep.subr.mxu0 %v424
    %994 = vmatpush1.msra.mxu0 %v423
    %995 = vmatprep.subr.mxu0 %v420
    %996 = vmatpush1.msra.mxu0 %v419
    %997 = vmatprep.subr.mxu0 %v416
    %998 = vmatpush1.msra.mxu0 %v415
    %999 = vmatprep.subr.mxu0 %v412
    %1000 = vmatpush1.msra.mxu0 %v411
    %1001 = vmatprep.subr.mxu0 %v408
    %1002 = vmatpush1.msra.mxu0 %v407
    %1003 = vmatprep.subr.mxu0 %v404
    %1004 = vmatpush1.msra.mxu0 %v403
    %1005 = vmatprep.subr.mxu0 %v400
    %1006 = vmatpush1.msra.mxu0 %v399
    %1007 = vmatprep.subr.mxu0 %v396
    %1008 = vmatpush1.msra.mxu0 %v395
    %1009 = vmatprep.subr.mxu0 %v392
    %1010 = vmatpush1.msra.mxu0 %v391
    %1011 = vmatprep.subr.mxu0 %v388
    %1012 = vmatpush1.msra.mxu0 %v387
    %1013 = vmatprep.subr.mxu0 %v384
    %1014 = vmatpush1.msra.mxu0 %v383
    %1015 = vmatprep.subr.mxu0 %v380
    %1016 = vmatpush1.msra.mxu0 %v379
    %1017 = vmatprep.subr.mxu0 %v376
    %1018 = vmatpush1.msra.mxu0 %v375
    %1019 = vmatprep.subr.mxu0 %v372
    %1020 = vmatpush1.msra.mxu0 %v371
    %1021 = vmatprep.subr.mxu0 %v368
    %1022 = vmatpush1.msra.mxu0 %v367
    %1023 = vmatprep.subr.mxu0 0.0
    %1024 = vmatpush2.msra.mxu0 0.0
    %1025 = vmatprep.subr.mxu0 0.0
    %1026 = vmatpush2.msra.mxu0 0.0
    %1027 = vmatprep.subr.mxu0 0.0
    %1028 = vmatpush2.msra.mxu0 0.0
    %1029 = vmatprep.subr.mxu0 0.0
    %1030 = vmatpush2.msra.mxu0 0.0
    %1031 = vmatprep.subr.mxu0 0.0
    %1032 = vmatpush2.msra.mxu0 0.0
    %1033 = vmatprep.subr.mxu0 0.0
    %1034 = vmatpush2.msra.mxu0 0.0
    %1035 = vmatprep.subr.mxu0 0.0
    %1036 = vmatpush2.msra.mxu0 0.0
    %1037 = vmatprep.subr.mxu0 0.0
    %1038 = vmatpush2.msra.mxu0 0.0
    %1039 = vmatprep.subr.mxu0 0.0
    %1040 = vmatpush2.msra.mxu0 0.0
    %1041 = vmatprep.subr.mxu0 0.0
    %1042 = vmatpush2.msra.mxu0 0.0
    %1043 = vmatprep.subr.mxu0 0.0
    %1044 = vmatpush2.msra.mxu0 0.0
    %1045 = vmatprep.subr.mxu0 0.0
    %1046 = vmatpush2.msra.mxu0 0.0
    %1047 = vmatprep.subr.mxu0 0.0
    %1048 = vmatpush2.msra.mxu0 0.0
    %1049 = vmatprep.subr.mxu0 0.0
    %1050 = vmatpush2.msra.mxu0 0.0
    %1051 = vmatprep.subr.mxu0 0.0
    %1052 = vmatpush2.msra.mxu0 0.0
    %1053 = vmatprep.subr.mxu0 0.0
    %1054 = vmatpush2.msra.mxu0 0.0
    %1055 = vmatprep.mubr.f32.mxu0 0.0
    %1056 = vmatmul.mubr.f32.gmra.mxu0 %v986
    %v1057 = vpop.f32.mrf.mxu0
    %v1058 = vadd.f32 0.0, %v1057
    %v1059 = vpop.f32.mrf.mxu0
    %v1060 = vadd.f32 0.0, %v1059
    %1061 = vdwg.mxu0
    %1062 = vmatprep.subr.mxu0 %v430
    %1063 = vmatpush1.msra.mxu0 %v429
    %1064 = vmatprep.subr.mxu0 %v426
    %1065 = vmatpush1.msra.mxu0 %v425
    %1066 = vmatprep.subr.mxu0 %v422
    %1067 = vmatpush1.msra.mxu0 %v421
    %1068 = vmatprep.subr.mxu0 %v418
    %1069 = vmatpush1.msra.mxu0 %v417
    %1070 = vmatprep.subr.mxu0 %v414
    %1071 = vmatpush1.msra.mxu0 %v413
    %1072 = vmatprep.subr.mxu0 %v410
    %1073 = vmatpush1.msra.mxu0 %v409
    %1074 = vmatprep.subr.mxu0 %v406
    %1075 = vmatpush1.msra.mxu0 %v405
    %1076 = vmatprep.subr.mxu0 %v402
    %1077 = vmatpush1.msra.mxu0 %v401
    %1078 = vmatprep.subr.mxu0 %v398
    %1079 = vmatpush1.msra.mxu0 %v397
    %1080 = vmatprep.subr.mxu0 %v394
    %1081 = vmatpush1.msra.mxu0 %v393
    %1082 = vmatprep.subr.mxu0 %v390
    %1083 = vmatpush1.msra.mxu0 %v389
    %1084 = vmatprep.subr.mxu0 %v386
    %1085 = vmatpush1.msra.mxu0 %v385
    %1086 = vmatprep.subr.mxu0 %v382
    %1087 = vmatpush1.msra.mxu0 %v381
    %1088 = vmatprep.subr.mxu0 %v378
    %1089 = vmatpush1.msra.mxu0 %v377
    %1090 = vmatprep.subr.mxu0 %v374
    %1091 = vmatpush1.msra.mxu0 %v373
    %1092 = vmatprep.subr.mxu0 %v370
    %1093 = vmatpush1.msra.mxu0 %v369
    %1094 = vmatprep.subr.mxu0 0.0
    %1095 = vmatpush2.msra.mxu0 0.0
    %1096 = vmatprep.subr.mxu0 0.0
    %1097 = vmatpush2.msra.mxu0 0.0
    %1098 = vmatprep.subr.mxu0 0.0
    %1099 = vmatpush2.msra.mxu0 0.0
    %1100 = vmatprep.subr.mxu0 0.0
    %1101 = vmatpush2.msra.mxu0 0.0
    %1102 = vmatprep.subr.mxu0 0.0
    %1103 = vmatpush2.msra.mxu0 0.0
    %1104 = vmatprep.subr.mxu0 0.0
    %1105 = vmatpush2.msra.mxu0 0.0
    %1106 = vmatprep.subr.mxu0 0.0
    %1107 = vmatpush2.msra.mxu0 0.0
    %1108 = vmatprep.subr.mxu0 0.0
    %1109 = vmatpush2.msra.mxu0 0.0
    %1110 = vmatprep.subr.mxu0 0.0
    %1111 = vmatpush2.msra.mxu0 0.0
    %1112 = vmatprep.subr.mxu0 0.0
    %1113 = vmatpush2.msra.mxu0 0.0
    %1114 = vmatprep.subr.mxu0 0.0
    %1115 = vmatpush2.msra.mxu0 0.0
    %1116 = vmatprep.subr.mxu0 0.0
    %1117 = vmatpush2.msra.mxu0 0.0
    %1118 = vmatprep.subr.mxu0 0.0
    %1119 = vmatpush2.msra.mxu0 0.0
    %1120 = vmatprep.subr.mxu0 0.0
    %1121 = vmatpush2.msra.mxu0 0.0
    %1122 = vmatprep.subr.mxu0 0.0
    %1123 = vmatpush2.msra.mxu0 0.0
    %1124 = vmatprep.subr.mxu0 0.0
    %1125 = vmatpush2.msra.mxu0 0.0
    %1126 = vmatprep.mubr.f32.mxu0 0.0
    %1127 = vmatmul.mubr.f32.gmra.mxu0 %v986
    %v1128 = vpop.f32.mrf.mxu0
    %v1129 = vadd.f32 0.0, %v1128
    %v1130 = vpop.f32.mrf.mxu0
    %v1131 = vadd.f32 0.0, %v1130
    %1132 = vdwg.mxu0
    %v1133 = vadd.f32 %v987, %v1058
    %v1134 = vadd.f32 %v988, %v1060
    %v1135 = vadd.f32 %v989, %v1129
    %v1136 = vadd.f32 %v990, %v1131
    %v1137 = vadd.f32 %v1133, %v586
    %v1138 = vadd.f32 %v1134, %v590
    %v1139 = vadd.f32 %v1135, %v594
    %v1140 = vadd.f32 %v1136, %v598
    %v1141 = vxor.u32 %v1137, 2147483648
    %v1142 = vmul.f32 %v1141, 1.442695
    %v1143 = vpow.pop %v1142
    %v1144 = vadd.f32 %v1143, 1.0
    %v1145 = vrcp.pop %v1144
    %v1146 = vmul.f32 1.0, %v1145
    %v1147 = vxor.u32 %v1138, 2147483648
    %v1148 = vmul.f32 %v1147, 1.442695
    %v1149 = vpow.pop %v1148
    %v1150 = vadd.f32 %v1149, 1.0
    %v1151 = vrcp.pop %v1150
    %v1152 = vmul.f32 1.0, %v1151
    %v1153 = vtanh.pop %v1139
    %v1154 = vxor.u32 %v1140, 2147483648
    %v1155 = vmul.f32 %v1154, 1.442695
    %v1156 = vpow.pop %v1155
    %v1157 = vadd.f32 %v1156, 1.0
    %v1158 = vrcp.pop %v1157
    %v1159 = vmul.f32 1.0, %v1158
    %v1160 = vmul.f32 %v1152, %v984
    %v1161 = vmul.f32 %v1146, %v1153
    %v1162 = vadd.f32 %v1160, %v1161
    %v1163 = vtanh.pop %v1162
    %v1164 = vmul.f32 %v1159, %v1163
    %v1165 = vld [vmem:[#allocation2 + $0x80] sm:$0xff]
    %v1166 = vld [vmem:[#allocation2 + $0x88] sm:$0xff]
    %v1167 = vld [vmem:[#allocation2 + $0x90] sm:$0xff]
    %v1168 = vld [vmem:[#allocation2 + $0x98] sm:$0xff]
    %1169 = vmatprep.subr.mxu0 %v428
    %1170 = vmatpush1.msra.mxu0 %v427
    %1171 = vmatprep.subr.mxu0 %v424
    %1172 = vmatpush1.msra.mxu0 %v423
    %1173 = vmatprep.subr.mxu0 %v420
    %1174 = vmatpush1.msra.mxu0 %v419
    %1175 = vmatprep.subr.mxu0 %v416
    %1176 = vmatpush1.msra.mxu0 %v415
    %1177 = vmatprep.subr.mxu0 %v412
    %1178 = vmatpush1.msra.mxu0 %v411
    %1179 = vmatprep.subr.mxu0 %v408
    %1180 = vmatpush1.msra.mxu0 %v407
    %1181 = vmatprep.subr.mxu0 %v404
    %1182 = vmatpush1.msra.mxu0 %v403
    %1183 = vmatprep.subr.mxu0 %v400
    %1184 = vmatpush1.msra.mxu0 %v399
    %1185 = vmatprep.subr.mxu0 %v396
    %1186 = vmatpush1.msra.mxu0 %v395
    %1187 = vmatprep.subr.mxu0 %v392
    %1188 = vmatpush1.msra.mxu0 %v391
    %1189 = vmatprep.subr.mxu0 %v388
    %1190 = vmatpush1.msra.mxu0 %v387
    %1191 = vmatprep.subr.mxu0 %v384
    %1192 = vmatpush1.msra.mxu0 %v383
    %1193 = vmatprep.subr.mxu0 %v380
    %1194 = vmatpush1.msra.mxu0 %v379
    %1195 = vmatprep.subr.mxu0 %v376
    %1196 = vmatpush1.msra.mxu0 %v375
    %1197 = vmatprep.subr.mxu0 %v372
    %1198 = vmatpush1.msra.mxu0 %v371
    %1199 = vmatprep.subr.mxu0 %v368
    %1200 = vmatpush1.msra.mxu0 %v367
    %1201 = vmatprep.subr.mxu0 0.0
    %1202 = vmatpush2.msra.mxu0 0.0
    %1203 = vmatprep.subr.mxu0 0.0
    %1204 = vmatpush2.msra.mxu0 0.0
    %1205 = vmatprep.subr.mxu0 0.0
    %1206 = vmatpush2.msra.mxu0 0.0
    %1207 = vmatprep.subr.mxu0 0.0
    %1208 = vmatpush2.msra.mxu0 0.0
    %1209 = vmatprep.subr.mxu0 0.0
    %1210 = vmatpush2.msra.mxu0 0.0
    %1211 = vmatprep.subr.mxu0 0.0
    %1212 = vmatpush2.msra.mxu0 0.0
    %1213 = vmatprep.subr.mxu0 0.0
    %1214 = vmatpush2.msra.mxu0 0.0
    %1215 = vmatprep.subr.mxu0 0.0
    %1216 = vmatpush2.msra.mxu0 0.0
    %1217 = vmatprep.subr.mxu0 0.0
    %1218 = vmatpush2.msra.mxu0 0.0
    %1219 = vmatprep.subr.mxu0 0.0
    %1220 = vmatpush2.msra.mxu0 0.0
    %1221 = vmatprep.subr.mxu0 0.0
    %1222 = vmatpush2.msra.mxu0 0.0
    %1223 = vmatprep.subr.mxu0 0.0
    %1224 = vmatpush2.msra.mxu0 0.0
    %1225 = vmatprep.subr.mxu0 0.0
    %1226 = vmatpush2.msra.mxu0 0.0
    %1227 = vmatprep.subr.mxu0 0.0
    %1228 = vmatpush2.msra.mxu0 0.0
    %1229 = vmatprep.subr.mxu0 0.0
    %1230 = vmatpush2.msra.mxu0 0.0
    %1231 = vmatprep.subr.mxu0 0.0
    %1232 = vmatpush2.msra.mxu0 0.0
    %1233 = vmatprep.mubr.f32.mxu0 0.0
    %1234 = vmatmul.mubr.f32.gmra.mxu0 %v1164
    %v1235 = vpop.f32.mrf.mxu0
    %v1236 = vadd.f32 0.0, %v1235
    %v1237 = vpop.f32.mrf.mxu0
    %v1238 = vadd.f32 0.0, %v1237
    %1239 = vdwg.mxu0
    %1240 = vmatprep.subr.mxu0 %v430
    %1241 = vmatpush1.msra.mxu0 %v429
    %1242 = vmatprep.subr.mxu0 %v426
    %1243 = vmatpush1.msra.mxu0 %v425
    %1244 = vmatprep.subr.mxu0 %v422
    %1245 = vmatpush1.msra.mxu0 %v421
    %1246 = vmatprep.subr.mxu0 %v418
    %1247 = vmatpush1.msra.mxu0 %v417
    %1248 = vmatprep.subr.mxu0 %v414
    %1249 = vmatpush1.msra.mxu0 %v413
    %1250 = vmatprep.subr.mxu0 %v410
    %1251 = vmatpush1.msra.mxu0 %v409
    %1252 = vmatprep.subr.mxu0 %v406
    %1253 = vmatpush1.msra.mxu0 %v405
    %1254 = vmatprep.subr.mxu0 %v402
    %1255 = vmatpush1.msra.mxu0 %v401
    %1256 = vmatprep.subr.mxu0 %v398
    %1257 = vmatpush1.msra.mxu0 %v397
    %1258 = vmatprep.subr.mxu0 %v394
    %1259 = vmatpush1.msra.mxu0 %v393
    %1260 = vmatprep.subr.mxu0 %v390
    %1261 = vmatpush1.msra.mxu0 %v389
    %1262 = vmatprep.subr.mxu0 %v386
    %1263 = vmatpush1.msra.mxu0 %v385
    %1264 = vmatprep.subr.mxu0 %v382
    %1265 = vmatpush1.msra.mxu0 %v381
    %1266 = vmatprep.subr.mxu0 %v378
    %1267 = vmatpush1.msra.mxu0 %v377
    %1268 = vmatprep.subr.mxu0 %v374
    %1269 = vmatpush1.msra.mxu0 %v373
    %1270 = vmatprep.subr.mxu0 %v370
    %1271 = vmatpush1.msra.mxu0 %v369
    %1272 = vmatprep.subr.mxu0 0.0
    %1273 = vmatpush2.msra.mxu0 0.0
    %1274 = vmatprep.subr.mxu0 0.0
    %1275 = vmatpush2.msra.mxu0 0.0
    %1276 = vmatprep.subr.mxu0 0.0
    %1277 = vmatpush2.msra.mxu0 0.0
    %1278 = vmatprep.subr.mxu0 0.0
    %1279 = vmatpush2.msra.mxu0 0.0
    %1280 = vmatprep.subr.mxu0 0.0
    %1281 = vmatpush2.msra.mxu0 0.0
    %1282 = vmatprep.subr.mxu0 0.0
    %1283 = vmatpush2.msra.mxu0 0.0
    %1284 = vmatprep.subr.mxu0 0.0
    %1285 = vmatpush2.msra.mxu0 0.0
    %1286 = vmatprep.subr.mxu0 0.0
    %1287 = vmatpush2.msra.mxu0 0.0
    %1288 = vmatprep.subr.mxu0 0.0
    %1289 = vmatpush2.msra.mxu0 0.0
    %1290 = vmatprep.subr.mxu0 0.0
    %1291 = vmatpush2.msra.mxu0 0.0
    %1292 = vmatprep.subr.mxu0 0.0
    %1293 = vmatpush2.msra.mxu0 0.0
    %1294 = vmatprep.subr.mxu0 0.0
    %1295 = vmatpush2.msra.mxu0 0.0
    %1296 = vmatprep.subr.mxu0 0.0
    %1297 = vmatpush2.msra.mxu0 0.0
    %1298 = vmatprep.subr.mxu0 0.0
    %1299 = vmatpush2.msra.mxu0 0.0
    %1300 = vmatprep.subr.mxu0 0.0
    %1301 = vmatpush2.msra.mxu0 0.0
    %1302 = vmatprep.subr.mxu0 0.0
    %1303 = vmatpush2.msra.mxu0 0.0
    %1304 = vmatprep.mubr.f32.mxu0 0.0
    %1305 = vmatmul.mubr.f32.gmra.mxu0 %v1164
    %v1306 = vpop.f32.mrf.mxu0
    %v1307 = vadd.f32 0.0, %v1306
    %v1308 = vpop.f32.mrf.mxu0
    %v1309 = vadd.f32 0.0, %v1308
    %1310 = vdwg.mxu0
    %v1311 = vadd.f32 %v1165, %v1236
    %v1312 = vadd.f32 %v1166, %v1238
    %v1313 = vadd.f32 %v1167, %v1307
    %v1314 = vadd.f32 %v1168, %v1309
    %v1315 = vadd.f32 %v1311, %v586
    %v1316 = vadd.f32 %v1312, %v590
    %v1317 = vadd.f32 %v1313, %v594
    %v1318 = vadd.f32 %v1314, %v598
    %v1319 = vxor.u32 %v1315, 2147483648
    %v1320 = vmul.f32 %v1319, 1.442695
    %v1321 = vpow.pop %v1320
    %v1322 = vadd.f32 %v1321, 1.0
    %v1323 = vrcp.pop %v1322
    %v1324 = vmul.f32 1.0, %v1323
    %v1325 = vxor.u32 %v1316, 2147483648
    %v1326 = vmul.f32 %v1325, 1.442695
    %v1327 = vpow.pop %v1326
    %v1328 = vadd.f32 %v1327, 1.0
    %v1329 = vrcp.pop %v1328
    %v1330 = vmul.f32 1.0, %v1329
    %v1331 = vtanh.pop %v1317
    %v1332 = vxor.u32 %v1318, 2147483648
    %v1333 = vmul.f32 %v1332, 1.442695
    %v1334 = vpow.pop %v1333
    %v1335 = vadd.f32 %v1334, 1.0
    %v1336 = vrcp.pop %v1335
    %v1337 = vmul.f32 1.0, %v1336
    %v1338 = vmul.f32 %v1330, %v1162
    %v1339 = vmul.f32 %v1324, %v1331
    %v1340 = vadd.f32 %v1338, %v1339
    %v1341 = vtanh.pop %v1340
    %v1342 = vmul.f32 %v1337, %v1341
    %v1343 = vld [vmem:[#allocation2 + $0xa0] sm:$0xff]
    %v1344 = vld [vmem:[#allocation2 + $0xa8] sm:$0xff]
    %v1345 = vld [vmem:[#allocation2 + $0xb0] sm:$0xff]
    %v1346 = vld [vmem:[#allocation2 + $0xb8] sm:$0xff]
    %1347 = vmatprep.subr.mxu0 %v428
    %1348 = vmatpush1.msra.mxu0 %v427
    %1349 = vmatprep.subr.mxu0 %v424
    %1350 = vmatpush1.msra.mxu0 %v423
    %1351 = vmatprep.subr.mxu0 %v420
    %1352 = vmatpush1.msra.mxu0 %v419
    %1353 = vmatprep.subr.mxu0 %v416
    %1354 = vmatpush1.msra.mxu0 %v415
    %1355 = vmatprep.subr.mxu0 %v412
    %1356 = vmatpush1.msra.mxu0 %v411
    %1357 = vmatprep.subr.mxu0 %v408
    %1358 = vmatpush1.msra.mxu0 %v407
    %1359 = vmatprep.subr.mxu0 %v404
    %1360 = vmatpush1.msra.mxu0 %v403
    %1361 = vmatprep.subr.mxu0 %v400
    %1362 = vmatpush1.msra.mxu0 %v399
    %1363 = vmatprep.subr.mxu0 %v396
    %1364 = vmatpush1.msra.mxu0 %v395
    %1365 = vmatprep.subr.mxu0 %v392
    %1366 = vmatpush1.msra.mxu0 %v391
    %1367 = vmatprep.subr.mxu0 %v388
    %1368 = vmatpush1.msra.mxu0 %v387
    %1369 = vmatprep.subr.mxu0 %v384
    %1370 = vmatpush1.msra.mxu0 %v383
    %1371 = vmatprep.subr.mxu0 %v380
    %1372 = vmatpush1.msra.mxu0 %v379
    %1373 = vmatprep.subr.mxu0 %v376
    %1374 = vmatpush1.msra.mxu0 %v375
    %1375 = vmatprep.subr.mxu0 %v372
    %1376 = vmatpush1.msra.mxu0 %v371
    %1377 = vmatprep.subr.mxu0 %v368
    %1378 = vmatpush1.msra.mxu0 %v367
    %1379 = vmatprep.subr.mxu0 0.0
    %1380 = vmatpush2.msra.mxu0 0.0
    %1381 = vmatprep.subr.mxu0 0.0
    %1382 = vmatpush2.msra.mxu0 0.0
    %1383 = vmatprep.subr.mxu0 0.0
    %1384 = vmatpush2.msra.mxu0 0.0
    %1385 = vmatprep.subr.mxu0 0.0
    %1386 = vmatpush2.msra.mxu0 0.0
    %1387 = vmatprep.subr.mxu0 0.0
    %1388 = vmatpush2.msra.mxu0 0.0
    %1389 = vmatprep.subr.mxu0 0.0
    %1390 = vmatpush2.msra.mxu0 0.0
    %1391 = vmatprep.subr.mxu0 0.0
    %1392 = vmatpush2.msra.mxu0 0.0
    %1393 = vmatprep.subr.mxu0 0.0
    %1394 = vmatpush2.msra.mxu0 0.0
    %1395 = vmatprep.subr.mxu0 0.0
    %1396 = vmatpush2.msra.mxu0 0.0
    %1397 = vmatprep.subr.mxu0 0.0
    %1398 = vmatpush2.msra.mxu0 0.0
    %1399 = vmatprep.subr.mxu0 0.0
    %1400 = vmatpush2.msra.mxu0 0.0
    %1401 = vmatprep.subr.mxu0 0.0
    %1402 = vmatpush2.msra.mxu0 0.0
    %1403 = vmatprep.subr.mxu0 0.0
    %1404 = vmatpush2.msra.mxu0 0.0
    %1405 = vmatprep.subr.mxu0 0.0
    %1406 = vmatpush2.msra.mxu0 0.0
    %1407 = vmatprep.subr.mxu0 0.0
    %1408 = vmatpush2.msra.mxu0 0.0
    %1409 = vmatprep.subr.mxu0 0.0
    %1410 = vmatpush2.msra.mxu0 0.0
    %1411 = vmatprep.mubr.f32.mxu0 0.0
    %1412 = vmatmul.mubr.f32.gmra.mxu0 %v1342
    %v1413 = vpop.f32.mrf.mxu0
    %v1414 = vadd.f32 0.0, %v1413
    %v1415 = vpop.f32.mrf.mxu0
    %v1416 = vadd.f32 0.0, %v1415
    %1417 = vdwg.mxu0
    %1418 = vmatprep.subr.mxu0 %v430
    %1419 = vmatpush1.msra.mxu0 %v429
    %1420 = vmatprep.subr.mxu0 %v426
    %1421 = vmatpush1.msra.mxu0 %v425
    %1422 = vmatprep.subr.mxu0 %v422
    %1423 = vmatpush1.msra.mxu0 %v421
    %1424 = vmatprep.subr.mxu0 %v418
    %1425 = vmatpush1.msra.mxu0 %v417
    %1426 = vmatprep.subr.mxu0 %v414
    %1427 = vmatpush1.msra.mxu0 %v413
    %1428 = vmatprep.subr.mxu0 %v410
    %1429 = vmatpush1.msra.mxu0 %v409
    %1430 = vmatprep.subr.mxu0 %v406
    %1431 = vmatpush1.msra.mxu0 %v405
    %1432 = vmatprep.subr.mxu0 %v402
    %1433 = vmatpush1.msra.mxu0 %v401
    %1434 = vmatprep.subr.mxu0 %v398
    %1435 = vmatpush1.msra.mxu0 %v397
    %1436 = vmatprep.subr.mxu0 %v394
    %1437 = vmatpush1.msra.mxu0 %v393
    %1438 = vmatprep.subr.mxu0 %v390
    %1439 = vmatpush1.msra.mxu0 %v389
    %1440 = vmatprep.subr.mxu0 %v386
    %1441 = vmatpush1.msra.mxu0 %v385
    %1442 = vmatprep.subr.mxu0 %v382
    %1443 = vmatpush1.msra.mxu0 %v381
    %1444 = vmatprep.subr.mxu0 %v378
    %1445 = vmatpush1.msra.mxu0 %v377
    %1446 = vmatprep.subr.mxu0 %v374
    %1447 = vmatpush1.msra.mxu0 %v373
    %1448 = vmatprep.subr.mxu0 %v370
    %1449 = vmatpush1.msra.mxu0 %v369
    %1450 = vmatprep.subr.mxu0 0.0
    %1451 = vmatpush2.msra.mxu0 0.0
    %1452 = vmatprep.subr.mxu0 0.0
    %1453 = vmatpush2.msra.mxu0 0.0
    %1454 = vmatprep.subr.mxu0 0.0
    %1455 = vmatpush2.msra.mxu0 0.0
    %1456 = vmatprep.subr.mxu0 0.0
    %1457 = vmatpush2.msra.mxu0 0.0
    %1458 = vmatprep.subr.mxu0 0.0
    %1459 = vmatpush2.msra.mxu0 0.0
    %1460 = vmatprep.subr.mxu0 0.0
    %1461 = vmatpush2.msra.mxu0 0.0
    %1462 = vmatprep.subr.mxu0 0.0
    %1463 = vmatpush2.msra.mxu0 0.0
    %1464 = vmatprep.subr.mxu0 0.0
    %1465 = vmatpush2.msra.mxu0 0.0
    %1466 = vmatprep.subr.mxu0 0.0
    %1467 = vmatpush2.msra.mxu0 0.0
    %1468 = vmatprep.subr.mxu0 0.0
    %1469 = vmatpush2.msra.mxu0 0.0
    %1470 = vmatprep.subr.mxu0 0.0
    %1471 = vmatpush2.msra.mxu0 0.0
    %1472 = vmatprep.subr.mxu0 0.0
    %1473 = vmatpush2.msra.mxu0 0.0
    %1474 = vmatprep.subr.mxu0 0.0
    %1475 = vmatpush2.msra.mxu0 0.0
    %1476 = vmatprep.subr.mxu0 0.0
    %1477 = vmatpush2.msra.mxu0 0.0
    %1478 = vmatprep.subr.mxu0 0.0
    %1479 = vmatpush2.msra.mxu0 0.0
    %1480 = vmatprep.subr.mxu0 0.0
    %1481 = vmatpush2.msra.mxu0 0.0
    %1482 = vmatprep.mubr.f32.mxu0 0.0
    %1483 = vmatmul.mubr.f32.gmra.mxu0 %v1342
    %v1484 = vpop.f32.mrf.mxu0
    %v1485 = vadd.f32 0.0, %v1484
    %v1486 = vpop.f32.mrf.mxu0
    %v1487 = vadd.f32 0.0, %v1486
    %1488 = vdwg.mxu0
    %v1489 = vadd.f32 %v1343, %v1414
    %v1490 = vadd.f32 %v1344, %v1416
    %v1491 = vadd.f32 %v1345, %v1485
    %v1492 = vadd.f32 %v1346, %v1487
    %v1493 = vadd.f32 %v1489, %v586
    %v1494 = vadd.f32 %v1490, %v590
    %v1495 = vadd.f32 %v1491, %v594
    %v1496 = vadd.f32 %v1492, %v598
    %v1497 = vxor.u32 %v1493, 2147483648
    %v1498 = vmul.f32 %v1497, 1.442695
    %v1499 = vpow.pop %v1498
    %v1500 = vadd.f32 %v1499, 1.0
    %v1501 = vrcp.pop %v1500
    %v1502 = vmul.f32 1.0, %v1501
    %v1503 = vxor.u32 %v1494, 2147483648
    %v1504 = vmul.f32 %v1503, 1.442695
    %v1505 = vpow.pop %v1504
    %v1506 = vadd.f32 %v1505, 1.0
    %v1507 = vrcp.pop %v1506
    %v1508 = vmul.f32 1.0, %v1507
    %v1509 = vtanh.pop %v1495
    %v1510 = vxor.u32 %v1496, 2147483648
    %v1511 = vmul.f32 %v1510, 1.442695
    %v1512 = vpow.pop %v1511
    %v1513 = vadd.f32 %v1512, 1.0
    %v1514 = vrcp.pop %v1513
    %v1515 = vmul.f32 1.0, %v1514
    %v1516 = vmul.f32 %v1508, %v1340
    %v1517 = vmul.f32 %v1502, %v1509
    %v1518 = vadd.f32 %v1516, %v1517
    %v1519 = vtanh.pop %v1518
    %v1520 = vmul.f32 %v1515, %v1519
    %v1521 = vld [vmem:[#allocation2 + $0xc0] sm:$0xff]
    %v1522 = vld [vmem:[#allocation2 + $0xc8] sm:$0xff]
    %v1523 = vld [vmem:[#allocation2 + $0xd0] sm:$0xff]
    %v1524 = vld [vmem:[#allocation2 + $0xd8] sm:$0xff]
    %1525 = vmatprep.subr.mxu0 %v428
    %1526 = vmatpush1.msra.mxu0 %v427
    %1527 = vmatprep.subr.mxu0 %v424
    %1528 = vmatpush1.msra.mxu0 %v423
    %1529 = vmatprep.subr.mxu0 %v420
    %1530 = vmatpush1.msra.mxu0 %v419
    %1531 = vmatprep.subr.mxu0 %v416
    %1532 = vmatpush1.msra.mxu0 %v415
    %1533 = vmatprep.subr.mxu0 %v412
    %1534 = vmatpush1.msra.mxu0 %v411
    %1535 = vmatprep.subr.mxu0 %v408
    %1536 = vmatpush1.msra.mxu0 %v407
    %1537 = vmatprep.subr.mxu0 %v404
    %1538 = vmatpush1.msra.mxu0 %v403
    %1539 = vmatprep.subr.mxu0 %v400
    %1540 = vmatpush1.msra.mxu0 %v399
    %1541 = vmatprep.subr.mxu0 %v396
    %1542 = vmatpush1.msra.mxu0 %v395
    %1543 = vmatprep.subr.mxu0 %v392
    %1544 = vmatpush1.msra.mxu0 %v391
    %1545 = vmatprep.subr.mxu0 %v388
    %1546 = vmatpush1.msra.mxu0 %v387
    %1547 = vmatprep.subr.mxu0 %v384
    %1548 = vmatpush1.msra.mxu0 %v383
    %1549 = vmatprep.subr.mxu0 %v380
    %1550 = vmatpush1.msra.mxu0 %v379
    %1551 = vmatprep.subr.mxu0 %v376
    %1552 = vmatpush1.msra.mxu0 %v375
    %1553 = vmatprep.subr.mxu0 %v372
    %1554 = vmatpush1.msra.mxu0 %v371
    %1555 = vmatprep.subr.mxu0 %v368
    %1556 = vmatpush1.msra.mxu0 %v367
    %1557 = vmatprep.subr.mxu0 0.0
    %1558 = vmatpush2.msra.mxu0 0.0
    %1559 = vmatprep.subr.mxu0 0.0
    %1560 = vmatpush2.msra.mxu0 0.0
    %1561 = vmatprep.subr.mxu0 0.0
    %1562 = vmatpush2.msra.mxu0 0.0
    %1563 = vmatprep.subr.mxu0 0.0
    %1564 = vmatpush2.msra.mxu0 0.0
    %1565 = vmatprep.subr.mxu0 0.0
    %1566 = vmatpush2.msra.mxu0 0.0
    %1567 = vmatprep.subr.mxu0 0.0
    %1568 = vmatpush2.msra.mxu0 0.0
    %1569 = vmatprep.subr.mxu0 0.0
    %1570 = vmatpush2.msra.mxu0 0.0
    %1571 = vmatprep.subr.mxu0 0.0
    %1572 = vmatpush2.msra.mxu0 0.0
    %1573 = vmatprep.subr.mxu0 0.0
    %1574 = vmatpush2.msra.mxu0 0.0
    %1575 = vmatprep.subr.mxu0 0.0
    %1576 = vmatpush2.msra.mxu0 0.0
    %1577 = vmatprep.subr.mxu0 0.0
    %1578 = vmatpush2.msra.mxu0 0.0
    %1579 = vmatprep.subr.mxu0 0.0
    %1580 = vmatpush2.msra.mxu0 0.0
    %1581 = vmatprep.subr.mxu0 0.0
    %1582 = vmatpush2.msra.mxu0 0.0
    %1583 = vmatprep.subr.mxu0 0.0
    %1584 = vmatpush2.msra.mxu0 0.0
    %1585 = vmatprep.subr.mxu0 0.0
    %1586 = vmatpush2.msra.mxu0 0.0
    %1587 = vmatprep.subr.mxu0 0.0
    %1588 = vmatpush2.msra.mxu0 0.0
    %1589 = vmatprep.mubr.f32.mxu0 0.0
    %1590 = vmatmul.mubr.f32.gmra.mxu0 %v1520
    %v1591 = vpop.f32.mrf.mxu0
    %v1592 = vadd.f32 0.0, %v1591
    %v1593 = vpop.f32.mrf.mxu0
    %v1594 = vadd.f32 0.0, %v1593
    %1595 = vdwg.mxu0
    %1596 = vmatprep.subr.mxu0 %v430
    %1597 = vmatpush1.msra.mxu0 %v429
    %1598 = vmatprep.subr.mxu0 %v426
    %1599 = vmatpush1.msra.mxu0 %v425
    %1600 = vmatprep.subr.mxu0 %v422
    %1601 = vmatpush1.msra.mxu0 %v421
    %1602 = vmatprep.subr.mxu0 %v418
    %1603 = vmatpush1.msra.mxu0 %v417
    %1604 = vmatprep.subr.mxu0 %v414
    %1605 = vmatpush1.msra.mxu0 %v413
    %1606 = vmatprep.subr.mxu0 %v410
    %1607 = vmatpush1.msra.mxu0 %v409
    %1608 = vmatprep.subr.mxu0 %v406
    %1609 = vmatpush1.msra.mxu0 %v405
    %1610 = vmatprep.subr.mxu0 %v402
    %1611 = vmatpush1.msra.mxu0 %v401
    %1612 = vmatprep.subr.mxu0 %v398
    %1613 = vmatpush1.msra.mxu0 %v397
    %1614 = vmatprep.subr.mxu0 %v394
    %1615 = vmatpush1.msra.mxu0 %v393
    %1616 = vmatprep.subr.mxu0 %v390
    %1617 = vmatpush1.msra.mxu0 %v389
    %1618 = vmatprep.subr.mxu0 %v386
    %1619 = vmatpush1.msra.mxu0 %v385
    %1620 = vmatprep.subr.mxu0 %v382
    %1621 = vmatpush1.msra.mxu0 %v381
    %1622 = vmatprep.subr.mxu0 %v378
    %1623 = vmatpush1.msra.mxu0 %v377
    %1624 = vmatprep.subr.mxu0 %v374
    %1625 = vmatpush1.msra.mxu0 %v373
    %1626 = vmatprep.subr.mxu0 %v370
    %1627 = vmatpush1.msra.mxu0 %v369
    %1628 = vmatprep.subr.mxu0 0.0
    %1629 = vmatpush2.msra.mxu0 0.0
    %1630 = vmatprep.subr.mxu0 0.0
    %1631 = vmatpush2.msra.mxu0 0.0
    %1632 = vmatprep.subr.mxu0 0.0
    %1633 = vmatpush2.msra.mxu0 0.0
    %1634 = vmatprep.subr.mxu0 0.0
    %1635 = vmatpush2.msra.mxu0 0.0
    %1636 = vmatprep.subr.mxu0 0.0
    %1637 = vmatpush2.msra.mxu0 0.0
    %1638 = vmatprep.subr.mxu0 0.0
    %1639 = vmatpush2.msra.mxu0 0.0
    %1640 = vmatprep.subr.mxu0 0.0
    %1641 = vmatpush2.msra.mxu0 0.0
    %1642 = vmatprep.subr.mxu0 0.0
    %1643 = vmatpush2.msra.mxu0 0.0
    %1644 = vmatprep.subr.mxu0 0.0
    %1645 = vmatpush2.msra.mxu0 0.0
    %1646 = vmatprep.subr.mxu0 0.0
    %1647 = vmatpush2.msra.mxu0 0.0
    %1648 = vmatprep.subr.mxu0 0.0
    %1649 = vmatpush2.msra.mxu0 0.0
    %1650 = vmatprep.subr.mxu0 0.0
    %1651 = vmatpush2.msra.mxu0 0.0
    %1652 = vmatprep.subr.mxu0 0.0
    %1653 = vmatpush2.msra.mxu0 0.0
    %1654 = vmatprep.subr.mxu0 0.0
    %1655 = vmatpush2.msra.mxu0 0.0
    %1656 = vmatprep.subr.mxu0 0.0
    %1657 = vmatpush2.msra.mxu0 0.0
    %1658 = vmatprep.subr.mxu0 0.0
    %1659 = vmatpush2.msra.mxu0 0.0
    %1660 = vmatprep.mubr.f32.mxu0 0.0
    %1661 = vmatmul.mubr.f32.gmra.mxu0 %v1520
    %v1662 = vpop.f32.mrf.mxu0
    %v1663 = vadd.f32 0.0, %v1662
    %v1664 = vpop.f32.mrf.mxu0
    %v1665 = vadd.f32 0.0, %v1664
    %1666 = vdwg.mxu0
    %v1667 = vadd.f32 %v1521, %v1592
    %v1668 = vadd.f32 %v1522, %v1594
    %v1669 = vadd.f32 %v1523, %v1663
    %v1670 = vadd.f32 %v1524, %v1665
    %v1671 = vadd.f32 %v1667, %v586
    %v1672 = vadd.f32 %v1668, %v590
    %v1673 = vadd.f32 %v1669, %v594
    %v1674 = vadd.f32 %v1670, %v598
    %v1675 = vxor.u32 %v1671, 2147483648
    %v1676 = vmul.f32 %v1675, 1.442695
    %v1677 = vpow.pop %v1676
    %v1678 = vadd.f32 %v1677, 1.0
    %v1679 = vrcp.pop %v1678
    %v1680 = vmul.f32 1.0, %v1679
    %v1681 = vxor.u32 %v1672, 2147483648
    %v1682 = vmul.f32 %v1681, 1.442695
    %v1683 = vpow.pop %v1682
    %v1684 = vadd.f32 %v1683, 1.0
    %v1685 = vrcp.pop %v1684
    %v1686 = vmul.f32 1.0, %v1685
    %v1687 = vtanh.pop %v1673
    %v1688 = vxor.u32 %v1674, 2147483648
    %v1689 = vmul.f32 %v1688, 1.442695
    %v1690 = vpow.pop %v1689
    %v1691 = vadd.f32 %v1690, 1.0
    %v1692 = vrcp.pop %v1691
    %v1693 = vmul.f32 1.0, %v1692
    %v1694 = vmul.f32 %v1686, %v1518
    %v1695 = vmul.f32 %v1680, %v1687
    %v1696 = vadd.f32 %v1694, %v1695
    %v1697 = vtanh.pop %v1696
    %v1698 = vmul.f32 %v1693, %v1697
    %v1699 = vld [vmem:[#allocation2 + $0xe0] sm:$0xff]
    %v1700 = vld [vmem:[#allocation2 + $0xe8] sm:$0xff]
    %v1701 = vld [vmem:[#allocation2 + $0xf0] sm:$0xff]
    %v1702 = vld [vmem:[#allocation2 + $0xf8] sm:$0xff]
    %1703 = vmatprep.subr.mxu0 %v428
    %1704 = vmatpush1.msra.mxu0 %v427
    %1705 = vmatprep.subr.mxu0 %v424
    %1706 = vmatpush1.msra.mxu0 %v423
    %1707 = vmatprep.subr.mxu0 %v420
    %1708 = vmatpush1.msra.mxu0 %v419
    %1709 = vmatprep.subr.mxu0 %v416
    %1710 = vmatpush1.msra.mxu0 %v415
    %1711 = vmatprep.subr.mxu0 %v412
    %1712 = vmatpush1.msra.mxu0 %v411
    %1713 = vmatprep.subr.mxu0 %v408
    %1714 = vmatpush1.msra.mxu0 %v407
    %1715 = vmatprep.subr.mxu0 %v404
    %1716 = vmatpush1.msra.mxu0 %v403
    %1717 = vmatprep.subr.mxu0 %v400
    %1718 = vmatpush1.msra.mxu0 %v399
    %1719 = vmatprep.subr.mxu0 %v396
    %1720 = vmatpush1.msra.mxu0 %v395
    %1721 = vmatprep.subr.mxu0 %v392
    %1722 = vmatpush1.msra.mxu0 %v391
    %1723 = vmatprep.subr.mxu0 %v388
    %1724 = vmatpush1.msra.mxu0 %v387
    %1725 = vmatprep.subr.mxu0 %v384
    %1726 = vmatpush1.msra.mxu0 %v383
    %1727 = vmatprep.subr.mxu0 %v380
    %1728 = vmatpush1.msra.mxu0 %v379
    %1729 = vmatprep.subr.mxu0 %v376
    %1730 = vmatpush1.msra.mxu0 %v375
    %1731 = vmatprep.subr.mxu0 %v372
    %1732 = vmatpush1.msra.mxu0 %v371
    %1733 = vmatprep.subr.mxu0 %v368
    %1734 = vmatpush1.msra.mxu0 %v367
    %1735 = vmatprep.subr.mxu0 0.0
    %1736 = vmatpush2.msra.mxu0 0.0
    %1737 = vmatprep.subr.mxu0 0.0
    %1738 = vmatpush2.msra.mxu0 0.0
    %1739 = vmatprep.subr.mxu0 0.0
    %1740 = vmatpush2.msra.mxu0 0.0
    %1741 = vmatprep.subr.mxu0 0.0
    %1742 = vmatpush2.msra.mxu0 0.0
    %1743 = vmatprep.subr.mxu0 0.0
    %1744 = vmatpush2.msra.mxu0 0.0
    %1745 = vmatprep.subr.mxu0 0.0
    %1746 = vmatpush2.msra.mxu0 0.0
    %1747 = vmatprep.subr.mxu0 0.0
    %1748 = vmatpush2.msra.mxu0 0.0
    %1749 = vmatprep.subr.mxu0 0.0
    %1750 = vmatpush2.msra.mxu0 0.0
    %1751 = vmatprep.subr.mxu0 0.0
    %1752 = vmatpush2.msra.mxu0 0.0
    %1753 = vmatprep.subr.mxu0 0.0
    %1754 = vmatpush2.msra.mxu0 0.0
    %1755 = vmatprep.subr.mxu0 0.0
    %1756 = vmatpush2.msra.mxu0 0.0
    %1757 = vmatprep.subr.mxu0 0.0
    %1758 = vmatpush2.msra.mxu0 0.0
    %1759 = vmatprep.subr.mxu0 0.0
    %1760 = vmatpush2.msra.mxu0 0.0
    %1761 = vmatprep.subr.mxu0 0.0
    %1762 = vmatpush2.msra.mxu0 0.0
    %1763 = vmatprep.subr.mxu0 0.0
    %1764 = vmatpush2.msra.mxu0 0.0
    %1765 = vmatprep.subr.mxu0 0.0
    %1766 = vmatpush2.msra.mxu0 0.0
    %1767 = vmatprep.mubr.f32.mxu0 0.0
    %1768 = vmatmul.mubr.f32.gmra.mxu0 %v1698
    %v1769 = vpop.f32.mrf.mxu0
    %v1770 = vadd.f32 0.0, %v1769
    %v1771 = vpop.f32.mrf.mxu0
    %v1772 = vadd.f32 0.0, %v1771
    %1773 = vdwg.mxu0
    %1774 = vmatprep.subr.mxu0 %v430
    %1775 = vmatpush1.msra.mxu0 %v429
    %1776 = vmatprep.subr.mxu0 %v426
    %1777 = vmatpush1.msra.mxu0 %v425
    %1778 = vmatprep.subr.mxu0 %v422
    %1779 = vmatpush1.msra.mxu0 %v421
    %1780 = vmatprep.subr.mxu0 %v418
    %1781 = vmatpush1.msra.mxu0 %v417
    %1782 = vmatprep.subr.mxu0 %v414
    %1783 = vmatpush1.msra.mxu0 %v413
    %1784 = vmatprep.subr.mxu0 %v410
    %1785 = vmatpush1.msra.mxu0 %v409
    %1786 = vmatprep.subr.mxu0 %v406
    %1787 = vmatpush1.msra.mxu0 %v405
    %1788 = vmatprep.subr.mxu0 %v402
    %1789 = vmatpush1.msra.mxu0 %v401
    %1790 = vmatprep.subr.mxu0 %v398
    %1791 = vmatpush1.msra.mxu0 %v397
    %1792 = vmatprep.subr.mxu0 %v394
    %1793 = vmatpush1.msra.mxu0 %v393
    %1794 = vmatprep.subr.mxu0 %v390
    %1795 = vmatpush1.msra.mxu0 %v389
    %1796 = vmatprep.subr.mxu0 %v386
    %1797 = vmatpush1.msra.mxu0 %v385
    %1798 = vmatprep.subr.mxu0 %v382
    %1799 = vmatpush1.msra.mxu0 %v381
    %1800 = vmatprep.subr.mxu0 %v378
    %1801 = vmatpush1.msra.mxu0 %v377
    %1802 = vmatprep.subr.mxu0 %v374
    %1803 = vmatpush1.msra.mxu0 %v373
    %1804 = vmatprep.subr.mxu0 %v370
    %1805 = vmatpush1.msra.mxu0 %v369
    %1806 = vmatprep.subr.mxu0 0.0
    %1807 = vmatpush2.msra.mxu0 0.0
    %1808 = vmatprep.subr.mxu0 0.0
    %1809 = vmatpush2.msra.mxu0 0.0
    %1810 = vmatprep.subr.mxu0 0.0
    %1811 = vmatpush2.msra.mxu0 0.0
    %1812 = vmatprep.subr.mxu0 0.0
    %1813 = vmatpush2.msra.mxu0 0.0
    %1814 = vmatprep.subr.mxu0 0.0
    %1815 = vmatpush2.msra.mxu0 0.0
    %1816 = vmatprep.subr.mxu0 0.0
    %1817 = vmatpush2.msra.mxu0 0.0
    %1818 = vmatprep.subr.mxu0 0.0
    %1819 = vmatpush2.msra.mxu0 0.0
    %1820 = vmatprep.subr.mxu0 0.0
    %1821 = vmatpush2.msra.mxu0 0.0
    %1822 = vmatprep.subr.mxu0 0.0
    %1823 = vmatpush2.msra.mxu0 0.0
    %1824 = vmatprep.subr.mxu0 0.0
    %1825 = vmatpush2.msra.mxu0 0.0
    %1826 = vmatprep.subr.mxu0 0.0
    %1827 = vmatpush2.msra.mxu0 0.0
    %1828 = vmatprep.subr.mxu0 0.0
    %1829 = vmatpush2.msra.mxu0 0.0
    %1830 = vmatprep.subr.mxu0 0.0
    %1831 = vmatpush2.msra.mxu0 0.0
    %1832 = vmatprep.subr.mxu0 0.0
    %1833 = vmatpush2.msra.mxu0 0.0
    %1834 = vmatprep.subr.mxu0 0.0
    %1835 = vmatpush2.msra.mxu0 0.0
    %1836 = vmatprep.subr.mxu0 0.0
    %1837 = vmatpush2.msra.mxu0 0.0
    %1838 = vmatprep.mubr.f32.mxu0 0.0
    %1839 = vmatmul.mubr.f32.gmra.mxu0 %v1698
    %v1840 = vpop.f32.mrf.mxu0
    %v1841 = vadd.f32 0.0, %v1840
    %v1842 = vpop.f32.mrf.mxu0
    %v1843 = vadd.f32 0.0, %v1842
    %1844 = vdwg.mxu0
    %v1845 = vadd.f32 %v1699, %v1770
    %v1846 = vadd.f32 %v1700, %v1772
    %v1847 = vadd.f32 %v1701, %v1841
    %v1848 = vadd.f32 %v1702, %v1843
    %v1849 = vadd.f32 %v1845, %v586
    %v1850 = vadd.f32 %v1846, %v590
    %v1851 = vadd.f32 %v1847, %v594
    %v1852 = vadd.f32 %v1848, %v598
    %v1853 = vxor.u32 %v1849, 2147483648
    %v1854 = vmul.f32 %v1853, 1.442695
    %v1855 = vpow.pop %v1854
    %v1856 = vadd.f32 %v1855, 1.0
    %v1857 = vrcp.pop %v1856
    %v1858 = vmul.f32 1.0, %v1857
    %v1859 = vxor.u32 %v1850, 2147483648
    %v1860 = vmul.f32 %v1859, 1.442695
    %v1861 = vpow.pop %v1860
    %v1862 = vadd.f32 %v1861, 1.0
    %v1863 = vrcp.pop %v1862
    %v1864 = vmul.f32 1.0, %v1863
    %v1865 = vtanh.pop %v1851
    %v1866 = vxor.u32 %v1852, 2147483648
    %v1867 = vmul.f32 %v1866, 1.442695
    %v1868 = vpow.pop %v1867
    %v1869 = vadd.f32 %v1868, 1.0
    %v1870 = vrcp.pop %v1869
    %v1871 = vmul.f32 1.0, %v1870
    %v1872 = vmul.f32 %v1864, %v1696
    %v1873 = vmul.f32 %v1858, %v1865
    %v1874 = vadd.f32 %v1872, %v1873
    %v1875 = vtanh.pop %v1874
    %v1876 = vmul.f32 %v1871, %v1875
    %v1877 = vld [vmem:[#allocation5] sm:$0xff]
    %v1878 = vld [vmem:[#allocation5 + $0x8] sm:$0xff]
    %v1879 = vld [vmem:[#allocation5 + $0x10] sm:$0xff]
    %v1880 = vld [vmem:[#allocation5 + $0x18] sm:$0xff]
    %v1881 = vld [vmem:[#allocation5 + $0x20] sm:$0xff]
    %v1882 = vld [vmem:[#allocation5 + $0x28] sm:$0xff]
    %v1883 = vld [vmem:[#allocation5 + $0x30] sm:$0xff]
    %v1884 = vld [vmem:[#allocation5 + $0x38] sm:$0xff]
    %v1885 = vld [vmem:[#allocation5 + $0x40] sm:$0xff]
    %v1886 = vld [vmem:[#allocation5 + $0x48] sm:$0xff]
    %v1887 = vld [vmem:[#allocation5 + $0x50] sm:$0xff]
    %v1888 = vld [vmem:[#allocation5 + $0x58] sm:$0xff]
    %v1889 = vld [vmem:[#allocation5 + $0x60] sm:$0xff]
    %v1890 = vld [vmem:[#allocation5 + $0x68] sm:$0xff]
    %v1891 = vld [vmem:[#allocation5 + $0x70] sm:$0xff]
    %v1892 = vld [vmem:[#allocation5 + $0x78] sm:$0xff]
    %v1893 = vld [vmem:[%s5] sm:$0x1]
    %v1895 = vlaneseq
    %v1896 = vshrl.u32 %v1895, 7
    %v1897 = vsub.s32 0, %v1896
    %v1898 = vrot.slane %v1893, %v1897
    %1900 = vmatprep.subr.mxu0 0.0
    %1901 = vmatpush1.msra.mxu0 %v1892
    %1902 = vmatprep.subr.mxu0 0.0
    %1903 = vmatpush1.msra.mxu0 %v1891
    %1904 = vmatprep.subr.mxu0 0.0
    %1905 = vmatpush1.msra.mxu0 %v1890
    %1906 = vmatprep.subr.mxu0 0.0
    %1907 = vmatpush1.msra.mxu0 %v1889
    %1908 = vmatprep.subr.mxu0 0.0
    %1909 = vmatpush1.msra.mxu0 %v1888
    %1910 = vmatprep.subr.mxu0 0.0
    %1911 = vmatpush1.msra.mxu0 %v1887
    %1912 = vmatprep.subr.mxu0 0.0
    %1913 = vmatpush1.msra.mxu0 %v1886
    %1914 = vmatprep.subr.mxu0 0.0
    %1915 = vmatpush1.msra.mxu0 %v1885
    %1916 = vmatprep.subr.mxu0 0.0
    %1917 = vmatpush1.msra.mxu0 %v1884
    %1918 = vmatprep.subr.mxu0 0.0
    %1919 = vmatpush1.msra.mxu0 %v1883
    %1920 = vmatprep.subr.mxu0 0.0
    %1921 = vmatpush1.msra.mxu0 %v1882
    %1922 = vmatprep.subr.mxu0 0.0
    %1923 = vmatpush1.msra.mxu0 %v1881
    %1924 = vmatprep.subr.mxu0 0.0
    %1925 = vmatpush1.msra.mxu0 %v1880
    %1926 = vmatprep.subr.mxu0 0.0
    %1927 = vmatpush1.msra.mxu0 %v1879
    %1928 = vmatprep.subr.mxu0 0.0
    %1929 = vmatpush1.msra.mxu0 %v1878
    %1930 = vmatprep.subr.mxu0 0.0
    %1931 = vmatpush1.msra.mxu0 %v1877
    %1932 = vmatprep.subr.mxu0 0.0
    %1933 = vmatpush2.msra.mxu0 0.0
    %1934 = vmatprep.subr.mxu0 0.0
    %1935 = vmatpush2.msra.mxu0 0.0
    %1936 = vmatprep.subr.mxu0 0.0
    %1937 = vmatpush2.msra.mxu0 0.0
    %1938 = vmatprep.subr.mxu0 0.0
    %1939 = vmatpush2.msra.mxu0 0.0
    %1940 = vmatprep.subr.mxu0 0.0
    %1941 = vmatpush2.msra.mxu0 0.0
    %1942 = vmatprep.subr.mxu0 0.0
    %1943 = vmatpush2.msra.mxu0 0.0
    %1944 = vmatprep.subr.mxu0 0.0
    %1945 = vmatpush2.msra.mxu0 0.0
    %1946 = vmatprep.subr.mxu0 0.0
    %1947 = vmatpush2.msra.mxu0 0.0
    %1948 = vmatprep.subr.mxu0 0.0
    %1949 = vmatpush2.msra.mxu0 0.0
    %1950 = vmatprep.subr.mxu0 0.0
    %1951 = vmatpush2.msra.mxu0 0.0
    %1952 = vmatprep.subr.mxu0 0.0
    %1953 = vmatpush2.msra.mxu0 0.0
    %1954 = vmatprep.subr.mxu0 0.0
    %1955 = vmatpush2.msra.mxu0 0.0
    %1956 = vmatprep.subr.mxu0 0.0
    %1957 = vmatpush2.msra.mxu0 0.0
    %1958 = vmatprep.subr.mxu0 0.0
    %1959 = vmatpush2.msra.mxu0 0.0
    %1960 = vmatprep.subr.mxu0 0.0
    %1961 = vmatpush2.msra.mxu0 0.0
    %1962 = vmatprep.subr.mxu0 0.0
    %1963 = vmatpush2.msra.mxu0 0.0
    %1964 = vmatprep.mubr.f32.mxu0 0.0
    %1965 = vmatmul.mubr.f32.gmra.mxu0 %v1876
    %v1966 = vpop.f32.mrf.mxu0
    %v1967 = vadd.f32 %v1898, %v1966
    %v1968 = vpop.f32.mrf.mxu0
    %1969 = vdwg.mxu0
    %1970 = vst [vmem:[%s6] sm:$0xff] %v1967
    // Predicated region
    $region34: #{lstm_model_forward.1} parent=1 // pred_check
      _
    $region35: #{lstm_model_forward.1} parent=1 // pred_check_branch
      %1972 = sbr.rel (0) target = $region37
    $region36: #{lstm_model_forward.1} parent=1 // pred_region
      _
    $region37: #{lstm_model_forward.1} parent=1 // pred_fallthru
      _
    // Predicated region
    $region38: #{lstm_model_forward.1} parent=1 // pred_check
      _
    $region39: #{lstm_model_forward.1} parent=1 // pred_check_branch
      %1974 = sbr.rel (0) target = $region41
    $region40: #{lstm_model_forward.1} parent=1 // pred_region
      _
    $region41: #{lstm_model_forward.1} parent=1 // pred_fallthru
      _
    %1975 = vsyncpa [#allocation4], 1
    %1976 = vsyncpa [#allocation6], 1

</llo_original>
